<compile_context>
chip_gen: v7x
topology: tpu7x:2x2x1
jax: 0.10.0
libtpu: 0.0.40
codegen_flags: <defaults>
</compile_context>

<pallas_src>
import functools

import jax
import jax.numpy as jnp
from jax.experimental import pallas as pl
from jax.experimental.pallas import tpu as pltpu

# Model hyper-parameters (small, consistent with the module's forward).
EMB = 32
HEADS = 4
DEPTH = 2
SEQ = 8
NUM_TOKENS = 100
NUM_CLASSES = 5
BATCH = 2
MAX_POOL = True
LN_EPS = 1e-5
FF = 4 * EMB
PER_BLOCK = 13  # number of parameter tensors per transformer block


def _layernorm(v, w, b):
    mu = jnp.mean(v, axis=-1, keepdims=True)
    var = jnp.mean((v - mu) ** 2, axis=-1, keepdims=True)
    return (v - mu) * jax.lax.rsqrt(var + LN_EPS) * w + b


def fused_transformer_kernel(ids_ref, tok_ref, pos_ref, qmask_ref, bbias_ref,
                             *rest, depth, heads, seq, batch, max_pool):
    n_blk = depth * PER_BLOCK
    blk_refs = rest[:n_blk]
    wc_ref, bc_ref = rest[n_blk], rest[n_blk + 1]
    o_ref = rest[n_blk + 2]

    bt = batch * seq
    vocab, emb = tok_ref.shape

    # --- Token embedding gather as a one-hot matmul (stays on the MXU, no
    #     data-dependent DMA) + pre-tiled positional encodings.  Dropout p=0.
    ids = ids_ref[...]                                                # (bt, 1) i32
    onehot = (jax.lax.broadcasted_iota(jnp.int32, (bt, vocab), 1) == ids
              ).astype(jnp.float32)
    x = jnp.dot(onehot, tok_ref[...], preferred_element_type=jnp.float32)
    x = x + pos_ref[...]                                              # (bt, emb) f32

    qmask = qmask_ref[...]                                            # (heads*bt, emb)
    bbias = bbias_ref[...]                                            # (heads*bt, bt)

    for d in range(depth):
        (wkT, wqT, wvT, wpT, bp, ln1w, ln1b,
         w1T, b1, w2T, b2, ln2w, ln2b) = blk_refs[d * PER_BLOCK:(d + 1) * PER_BLOCK]

        # K/Q/V for all heads: one full-width matmul each (block-diagonal
        # weights; emb**-0.25 scale already folded into wq/wk wrapper-side).
        xb = x.astype(jnp.bfloat16)
        k = jnp.dot(xb, wkT[...], preferred_element_type=jnp.float32)   # (bt, emb)
        q = jnp.dot(xb, wqT[...], preferred_element_type=jnp.float32)
        v = jnp.dot(xb, wvT[...], preferred_element_type=jnp.float32)

        # All (head, batch) score matrices in one matmul.  Rows of q_rep are
        # ordered (head, batch, time); zeroing q outside its head's columns and
        # adding a -1e30 cross-batch bias makes the full-E contraction exactly
        # equal the per-head, per-batch (t x t) dot products of the reference.
        q_rep = (jnp.tile(q, (heads, 1)) * qmask).astype(jnp.bfloat16)   # (h*bt, emb)
        scores = jnp.einsum('re,ce->rc', q_rep, k.astype(jnp.bfloat16),
                            preferred_element_type=jnp.float32)          # (h*bt, bt)
        scores = scores + bbias
        scores = scores - jnp.max(scores, axis=-1, keepdims=True)
        p = jnp.exp(scores)
        p = p * pl.reciprocal(jnp.sum(p, axis=-1, keepdims=True), approx=True)

        att_r = jnp.einsum('rc,ce->re', p.astype(jnp.bfloat16),
                           v.astype(jnp.bfloat16),
                           preferred_element_type=jnp.float32)            # (h*bt, emb)
        # Keep each row's own-head columns, then collapse the head axis.
        att = (att_r * qmask).reshape(heads, bt, emb).sum(axis=0)         # (bt, emb)
        att = jnp.dot(att.astype(jnp.bfloat16), wpT[...],
                      preferred_element_type=jnp.float32) + bp[...]

        # Residual + LayerNorm 1 (dropout p=0 -> identity).
        x = _layernorm(att + x, ln1w[...], ln1b[...])

        # Feed-forward: Linear -> ReLU -> Linear.
        h1 = jnp.dot(x.astype(jnp.bfloat16), w1T[...],
                     preferred_element_type=jnp.float32) + b1[...]
        h1 = jnp.maximum(h1, 0.0)
        ff = jnp.dot(h1.astype(jnp.bfloat16), w2T[...],
                     preferred_element_type=jnp.float32) + b2[...]

        # Residual + LayerNorm 2.
        x = _layernorm(ff + x, ln2w[...], ln2b[...])

    # --- Pool over time, classify, log_softmax.
    x3 = x.reshape(batch, seq, emb)
    pooled = jnp.max(x3, axis=1) if max_pool else jnp.mean(x3, axis=1)    # (batch, emb)
    logits = jnp.dot(pooled.astype(jnp.bfloat16), wc_ref[...],
                     preferred_element_type=jnp.float32) + bc_ref[...]
    shifted = logits - jnp.max(logits, axis=-1, keepdims=True)
    lse = jnp.log(jnp.sum(jnp.exp(shifted), axis=-1, keepdims=True))
    o_ref[...] = (shifted - lse).astype(o_ref.dtype)


# ---------------------------------------------------------------------------
# Wrapper-side (amortized) parameter preparation.
# ---------------------------------------------------------------------------
def _block_diag(w, heads):
    s = w.shape[0]
    e = heads * s
    full = jnp.zeros((e, e), w.dtype)
    for h in range(heads):
        full = full.at[h * s:(h + 1) * s, h * s:(h + 1) * s].set(w)
    return full


def pack_params(params):
    """Expand shared (s,s) q/k/v Linears to block-diagonal (E,E), fold the
    emb**-0.25 scale into wq/wk, pre-transpose every Linear to (in, out), cast
    MXU operands to bf16, tile the positional encodings over the batch, and
    build the attention head/batch masks."""
    scale = float(EMB) ** -0.25
    bt = BATCH * SEQ
    s = EMB // HEADS

    pos_tiled = jnp.tile(params["pos_emb"][:SEQ], (BATCH, 1)).astype(jnp.float32)

    head_of_row = jnp.arange(HEADS * bt) // bt
    head_of_col = jnp.arange(EMB) // s
    qmask = (head_of_row[:, None] == head_of_col[None, :]).astype(jnp.float32)

    batch_of_row = (jnp.arange(HEADS * bt) % bt) // SEQ
    batch_of_col = jnp.arange(bt) // SEQ
    bbias = jnp.where(batch_of_row[:, None] == batch_of_col[None, :],
                      0.0, -1e30).astype(jnp.float32)

    blocks = []
    for (wk, wq, wv, wp, bp, ln1w, ln1b, w1, b1, w2, b2, ln2w, ln2b) in params["blocks"]:
        blocks += [
            (_block_diag(wk, HEADS).T * scale).astype(jnp.bfloat16),   # wkT
            (_block_diag(wq, HEADS).T * scale).astype(jnp.bfloat16),   # wqT
            _block_diag(wv, HEADS).T.astype(jnp.bfloat16),             # wvT
            wp.T.astype(jnp.bfloat16), bp,                             # project_heads
            ln1w, ln1b,
            w1.T.astype(jnp.bfloat16), b1,                             # ff Linear 1
            w2.T.astype(jnp.bfloat16), b2,                             # ff Linear 2
            ln2w, ln2b,
        ]

    wcT = params["wc"].T.astype(jnp.bfloat16)
    return (params["tok_emb"].astype(jnp.float32), pos_tiled, qmask, bbias,
            tuple(blocks), wcT, params["bc"])


def forward(token_ids, packed):
    tok_emb, pos_tiled, qmask, bbias, blocks, wcT, bc = packed
    ids2d = token_ids.reshape(BATCH * SEQ, 1).astype(jnp.int32)
    args = (ids2d, tok_emb, pos_tiled, qmask, bbias) + blocks + (wcT, bc)
    kernel = functools.partial(
        fused_transformer_kernel,
        depth=DEPTH, heads=HEADS, seq=SEQ, batch=BATCH, max_pool=MAX_POOL)
    return pl.pallas_call(
        kernel,
        out_shape=jax.ShapeDtypeStruct((BATCH, NUM_CLASSES), jnp.float32),
        in_specs=[pl.BlockSpec(memory_space=pltpu.MemorySpace.VMEM)] * len(args),
        out_specs=pl.BlockSpec(memory_space=pltpu.MemorySpace.VMEM),
    )(*args)


def init_params(key):
    s = EMB // HEADS

    def w(k, shape, scale=0.05):
        return (scale * jax.random.normal(k, shape)).astype(jnp.float32)

    keys = jax.random.split(key, 3 + 6 * DEPTH)
    ki = iter(keys)

    params = {
        "tok_emb": w(next(ki), (NUM_TOKENS, EMB), 1.0),
        "pos_emb": w(next(ki), (SEQ, EMB), 1.0),
        "wc": w(next(ki), (NUM_CLASSES, EMB)),
        "bc": jnp.zeros((1, NUM_CLASSES), jnp.float32),
        "blocks": [],
    }
    for _ in range(DEPTH):
        blk = (
            w(next(ki), (s, s)),                       # to_keys   (shared across heads)
            w(next(ki), (s, s)),                       # to_queries
            w(next(ki), (s, s)),                       # to_values
            w(next(ki), (EMB, EMB)),                   # project_heads W
            jnp.zeros((1, EMB), jnp.float32),          # project_heads b
            jnp.ones((1, EMB), jnp.float32),           # ln1 weight
            jnp.zeros((1, EMB), jnp.float32),          # ln1 bias
            w(next(ki), (FF, EMB)),                    # ff W1
            jnp.zeros((1, FF), jnp.float32),           # ff b1
            w(next(ki), (EMB, FF)),                    # ff W2
            jnp.zeros((1, EMB), jnp.float32),          # ff b2
            jnp.ones((1, EMB), jnp.float32),           # ln2 weight
            jnp.zeros((1, EMB), jnp.float32),          # ln2 bias
        )
        params["blocks"].append(blk)
    return params


if __name__ == "__main__":
    key = jax.random.PRNGKey(0)
    k_tok, k_par = jax.random.split(key)
    token_ids = jax.random.randint(k_tok, (BATCH, SEQ), 0, NUM_TOKENS, dtype=jnp.int32)
    params = init_params(k_par)
    packed = pack_params(params)
    out = forward(token_ids, packed)
    out = jax.block_until_ready(out)
    assert out.shape == (BATCH, NUM_CLASSES)
    assert bool(jnp.all(jnp.isfinite(out)))
    print("KERNEL_OK")
</pallas_src>

<mosaic_0001>
module attributes {stable_mosaic.version = 11 : i64} {
  func.func @fused_transformer_kernel(%arg0: memref<16x1xi32, #tpu.memory_space<vmem>>, %arg1: memref<100x32xf32, #tpu.memory_space<vmem>>, %arg2: memref<16x32xf32, #tpu.memory_space<vmem>>, %arg3: memref<64x32xf32, #tpu.memory_space<vmem>>, %arg4: memref<64x16xf32, #tpu.memory_space<vmem>>, %arg5: memref<32x32xbf16, #tpu.memory_space<vmem>>, %arg6: memref<32x32xbf16, #tpu.memory_space<vmem>>, %arg7: memref<32x32xbf16, #tpu.memory_space<vmem>>, %arg8: memref<32x32xbf16, #tpu.memory_space<vmem>>, %arg9: memref<1x32xf32, #tpu.memory_space<vmem>>, %arg10: memref<1x32xf32, #tpu.memory_space<vmem>>, %arg11: memref<1x32xf32, #tpu.memory_space<vmem>>, %arg12: memref<32x128xbf16, #tpu.memory_space<vmem>>, %arg13: memref<1x128xf32, #tpu.memory_space<vmem>>, %arg14: memref<128x32xbf16, #tpu.memory_space<vmem>>, %arg15: memref<1x32xf32, #tpu.memory_space<vmem>>, %arg16: memref<1x32xf32, #tpu.memory_space<vmem>>, %arg17: memref<1x32xf32, #tpu.memory_space<vmem>>, %arg18: memref<32x32xbf16, #tpu.memory_space<vmem>>, %arg19: memref<32x32xbf16, #tpu.memory_space<vmem>>, %arg20: memref<32x32xbf16, #tpu.memory_space<vmem>>, %arg21: memref<32x32xbf16, #tpu.memory_space<vmem>>, %arg22: memref<1x32xf32, #tpu.memory_space<vmem>>, %arg23: memref<1x32xf32, #tpu.memory_space<vmem>>, %arg24: memref<1x32xf32, #tpu.memory_space<vmem>>, %arg25: memref<32x128xbf16, #tpu.memory_space<vmem>>, %arg26: memref<1x128xf32, #tpu.memory_space<vmem>>, %arg27: memref<128x32xbf16, #tpu.memory_space<vmem>>, %arg28: memref<1x32xf32, #tpu.memory_space<vmem>>, %arg29: memref<1x32xf32, #tpu.memory_space<vmem>>, %arg30: memref<1x32xf32, #tpu.memory_space<vmem>>, %arg31: memref<32x5xbf16, #tpu.memory_space<vmem>>, %arg32: memref<1x5xf32, #tpu.memory_space<vmem>>, %arg33: memref<2x5xf32, #tpu.memory_space<vmem>>) attributes {dimension_semantics = [], scalar_prefetch = 0 : i64, scratch_operands = 0 : i64, tpu.core_type = #tpu.core_type<tc>} {
    %c0 = arith.constant 0 : index
    %c0_0 = arith.constant 0 : index
    %0 = vector.load %arg0[%c0, %c0_0] : memref<16x1xi32, #tpu.memory_space<vmem>>, vector<16x1xi32>
    %1 = tpu.iota {dimensions = array<i32: 1>} : vector<16x100xi32>
    %2 = vector.broadcast %0 : vector<16x1xi32> to vector<16x100xi32>
    %3 = arith.cmpi eq, %1, %2 : vector<16x100xi32>
    %4 = arith.extui %3 : vector<16x100xi1> to vector<16x100xi32>
    %5 = arith.sitofp %4 : vector<16x100xi32> to vector<16x100xf32>
    %c0_1 = arith.constant 0 : index
    %c0_2 = arith.constant 0 : index
    %6 = vector.load %arg1[%c0_1, %c0_2] : memref<100x32xf32, #tpu.memory_space<vmem>>, vector<100x32xf32>
    %cst = arith.constant dense<0.000000e+00> : vector<16x32xf32>
    %7 = tpu.matmul %5, %6, %cst {dimension_numbers = #tpu.dot_dimension_numbers<[1], [0], [0], [1], [0, 0, 1, 1], [], []>} : vector<16x100xf32>, vector<100x32xf32>, vector<16x32xf32> -> vector<16x32xf32>
    %c0_3 = arith.constant 0 : index
    %c0_4 = arith.constant 0 : index
    %8 = vector.load %arg2[%c0_3, %c0_4] : memref<16x32xf32, #tpu.memory_space<vmem>>, vector<16x32xf32>
    %9 = arith.addf %7, %8 : vector<16x32xf32>
    %c0_5 = arith.constant 0 : index
    %c0_6 = arith.constant 0 : index
    %10 = vector.load %arg3[%c0_5, %c0_6] : memref<64x32xf32, #tpu.memory_space<vmem>>, vector<64x32xf32>
    %c0_7 = arith.constant 0 : index
    %c0_8 = arith.constant 0 : index
    %11 = vector.load %arg4[%c0_7, %c0_8] : memref<64x16xf32, #tpu.memory_space<vmem>>, vector<64x16xf32>
    %12 = arith.truncf %9 : vector<16x32xf32> to vector<16x32xbf16>
    %c0_9 = arith.constant 0 : index
    %c0_10 = arith.constant 0 : index
    %13 = vector.load %arg5[%c0_9, %c0_10] : memref<32x32xbf16, #tpu.memory_space<vmem>>, vector<32x32xbf16>
    %cst_11 = arith.constant dense<0.000000e+00> : vector<16x32xf32>
    %14 = tpu.matmul %12, %13, %cst_11 {dimension_numbers = #tpu.dot_dimension_numbers<[1], [0], [0], [1], [0, 0, 1, 1], [], []>} : vector<16x32xbf16>, vector<32x32xbf16>, vector<16x32xf32> -> vector<16x32xf32>
    %c0_12 = arith.constant 0 : index
    %c0_13 = arith.constant 0 : index
    %15 = vector.load %arg6[%c0_12, %c0_13] : memref<32x32xbf16, #tpu.memory_space<vmem>>, vector<32x32xbf16>
    %cst_14 = arith.constant dense<0.000000e+00> : vector<16x32xf32>
    %16 = tpu.matmul %12, %15, %cst_14 {dimension_numbers = #tpu.dot_dimension_numbers<[1], [0], [0], [1], [0, 0, 1, 1], [], []>} : vector<16x32xbf16>, vector<32x32xbf16>, vector<16x32xf32> -> vector<16x32xf32>
    %c0_15 = arith.constant 0 : index
    %c0_16 = arith.constant 0 : index
    %17 = vector.load %arg7[%c0_15, %c0_16] : memref<32x32xbf16, #tpu.memory_space<vmem>>, vector<32x32xbf16>
    %cst_17 = arith.constant dense<0.000000e+00> : vector<16x32xf32>
    %18 = tpu.matmul %12, %17, %cst_17 {dimension_numbers = #tpu.dot_dimension_numbers<[1], [0], [0], [1], [0, 0, 1, 1], [], []>} : vector<16x32xbf16>, vector<32x32xbf16>, vector<16x32xf32> -> vector<16x32xf32>
    %19 = tpu.concatenate %16, %16, %16, %16 in 0 : vector<16x32xf32>, vector<16x32xf32>, vector<16x32xf32>, vector<16x32xf32> -> vector<64x32xf32>
    %20 = arith.mulf %19, %10 : vector<64x32xf32>
    %21 = arith.truncf %20 : vector<64x32xf32> to vector<64x32xbf16>
    %22 = arith.truncf %14 : vector<16x32xf32> to vector<16x32xbf16>
    "tpu.trace_start"() <{level = 10 : i32, message = "re,ce->rc"}> : () -> ()
    %cst_18 = arith.constant dense<0.000000e+00> : vector<64x16xf32>
    %23 = tpu.matmul %21, %22, %cst_18 {dimension_numbers = #tpu.dot_dimension_numbers<[1], [1], [0], [0], [0, 0, 1, 0], [], []>} : vector<64x32xbf16>, vector<16x32xbf16>, vector<64x16xf32> -> vector<64x16xf32>
    "tpu.trace_stop"() : () -> ()
    %24 = arith.addf %23, %11 : vector<64x16xf32>
    %cst_19 = arith.constant dense<0xFF800000> : vector<64xf32>
    %25 = vector.multi_reduction <maximumf>, %24, %cst_19 [1] : vector<64x16xf32> to vector<64xf32>
    %26 = vector.shape_cast %25 : vector<64xf32> to vector<64x1xf32>
    %27 = vector.broadcast %26 : vector<64x1xf32> to vector<64x16xf32>
    %28 = arith.subf %24, %27 : vector<64x16xf32>
    %29 = math.exp %28 : vector<64x16xf32>
    %cst_20 = arith.constant dense<0.000000e+00> : vector<64xf32>
    %30 = vector.multi_reduction <add>, %29, %cst_20 [1] : vector<64x16xf32> to vector<64xf32>
    %31 = vector.shape_cast %30 : vector<64xf32> to vector<64x1xf32>
    %32 = tpu.reciprocal %31 {approx = true} : vector<64x1xf32> -> vector<64x1xf32>
    %33 = vector.broadcast %32 : vector<64x1xf32> to vector<64x16xf32>
    %34 = arith.mulf %29, %33 : vector<64x16xf32>
    %35 = arith.truncf %34 : vector<64x16xf32> to vector<64x16xbf16>
    %36 = arith.truncf %18 : vector<16x32xf32> to vector<16x32xbf16>
    "tpu.trace_start"() <{level = 10 : i32, message = "rc,ce->re"}> : () -> ()
    %cst_21 = arith.constant dense<0.000000e+00> : vector<64x32xf32>
    %37 = tpu.matmul %35, %36, %cst_21 {dimension_numbers = #tpu.dot_dimension_numbers<[1], [0], [0], [1], [0, 0, 1, 1], [], []>} : vector<64x16xbf16>, vector<16x32xbf16>, vector<64x32xf32> -> vector<64x32xf32>
    "tpu.trace_stop"() : () -> ()
    %38 = arith.mulf %37, %10 : vector<64x32xf32>
    %39 = vector.shape_cast %38 : vector<64x32xf32> to vector<4x16x32xf32>
    %cst_22 = arith.constant dense<0.000000e+00> : vector<16x32xf32>
    %40 = vector.multi_reduction <add>, %39, %cst_22 [0] : vector<4x16x32xf32> to vector<16x32xf32>
    %41 = arith.truncf %40 : vector<16x32xf32> to vector<16x32xbf16>
    %c0_23 = arith.constant 0 : index
    %c0_24 = arith.constant 0 : index
    %42 = vector.load %arg8[%c0_23, %c0_24] : memref<32x32xbf16, #tpu.memory_space<vmem>>, vector<32x32xbf16>
    %cst_25 = arith.constant dense<0.000000e+00> : vector<16x32xf32>
    %43 = tpu.matmul %41, %42, %cst_25 {dimension_numbers = #tpu.dot_dimension_numbers<[1], [0], [0], [1], [0, 0, 1, 1], [], []>} : vector<16x32xbf16>, vector<32x32xbf16>, vector<16x32xf32> -> vector<16x32xf32>
    %c0_26 = arith.constant 0 : index
    %c0_27 = arith.constant 0 : index
    %44 = vector.load %arg9[%c0_26, %c0_27] : memref<1x32xf32, #tpu.memory_space<vmem>>, vector<1x32xf32>
    %45 = vector.broadcast %44 : vector<1x32xf32> to vector<16x32xf32>
    %46 = arith.addf %43, %45 : vector<16x32xf32>
    %47 = arith.addf %46, %9 : vector<16x32xf32>
    %c0_28 = arith.constant 0 : index
    %c0_29 = arith.constant 0 : index
    %48 = vector.load %arg10[%c0_28, %c0_29] : memref<1x32xf32, #tpu.memory_space<vmem>>, vector<1x32xf32>
    %c0_30 = arith.constant 0 : index
    %c0_31 = arith.constant 0 : index
    %49 = vector.load %arg11[%c0_30, %c0_31] : memref<1x32xf32, #tpu.memory_space<vmem>>, vector<1x32xf32>
    %cst_32 = arith.constant dense<0.000000e+00> : vector<16xf32>
    %50 = vector.multi_reduction <add>, %47, %cst_32 [1] : vector<16x32xf32> to vector<16xf32>
    %51 = vector.shape_cast %50 : vector<16xf32> to vector<16x1xf32>
    %cst_33 = arith.constant 3.200000e+01 : f32
    %52 = vector.broadcast %cst_33 : f32 to vector<16x1xf32>
    %53 = arith.divf %51, %52 : vector<16x1xf32>
    %54 = vector.broadcast %53 : vector<16x1xf32> to vector<16x32xf32>
    %55 = arith.subf %47, %54 : vector<16x32xf32>
    %56 = arith.mulf %55, %55 : vector<16x32xf32>
    %cst_34 = arith.constant dense<0.000000e+00> : vector<16xf32>
    %57 = vector.multi_reduction <add>, %56, %cst_34 [1] : vector<16x32xf32> to vector<16xf32>
    %58 = vector.shape_cast %57 : vector<16xf32> to vector<16x1xf32>
    %cst_35 = arith.constant 3.200000e+01 : f32
    %59 = vector.broadcast %cst_35 : f32 to vector<16x1xf32>
    %60 = arith.divf %58, %59 : vector<16x1xf32>
    %61 = vector.broadcast %53 : vector<16x1xf32> to vector<16x32xf32>
    %62 = arith.subf %47, %61 : vector<16x32xf32>
    %cst_36 = arith.constant 9.99999974E-6 : f32
    %63 = vector.broadcast %cst_36 : f32 to vector<16x1xf32>
    %64 = arith.addf %60, %63 : vector<16x1xf32>
    %65 = math.rsqrt %64 : vector<16x1xf32>
    %66 = vector.broadcast %65 : vector<16x1xf32> to vector<16x32xf32>
    %67 = arith.mulf %62, %66 : vector<16x32xf32>
    %68 = vector.broadcast %48 : vector<1x32xf32> to vector<16x32xf32>
    %69 = arith.mulf %67, %68 : vector<16x32xf32>
    %70 = vector.broadcast %49 : vector<1x32xf32> to vector<16x32xf32>
    %71 = arith.addf %69, %70 : vector<16x32xf32>
    %72 = arith.truncf %71 : vector<16x32xf32> to vector<16x32xbf16>
    %c0_37 = arith.constant 0 : index
    %c0_38 = arith.constant 0 : index
    %73 = vector.load %arg12[%c0_37, %c0_38] : memref<32x128xbf16, #tpu.memory_space<vmem>>, vector<32x128xbf16>
    %cst_39 = arith.constant dense<0.000000e+00> : vector<16x128xf32>
    %74 = tpu.matmul %72, %73, %cst_39 {dimension_numbers = #tpu.dot_dimension_numbers<[1], [0], [0], [1], [0, 0, 1, 1], [], []>} : vector<16x32xbf16>, vector<32x128xbf16>, vector<16x128xf32> -> vector<16x128xf32>
    %c0_40 = arith.constant 0 : index
    %c0_41 = arith.constant 0 : index
    %75 = vector.load %arg13[%c0_40, %c0_41] : memref<1x128xf32, #tpu.memory_space<vmem>>, vector<1x128xf32>
    %76 = vector.broadcast %75 : vector<1x128xf32> to vector<16x128xf32>
    %77 = arith.addf %74, %76 : vector<16x128xf32>
    %cst_42 = arith.constant 0.000000e+00 : f32
    %78 = vector.broadcast %cst_42 : f32 to vector<16x128xf32>
    %79 = arith.maximumf %77, %78 : vector<16x128xf32>
    %80 = arith.truncf %79 : vector<16x128xf32> to vector<16x128xbf16>
    %c0_43 = arith.constant 0 : index
    %c0_44 = arith.constant 0 : index
    %81 = vector.load %arg14[%c0_43, %c0_44] : memref<128x32xbf16, #tpu.memory_space<vmem>>, vector<128x32xbf16>
    %cst_45 = arith.constant dense<0.000000e+00> : vector<16x32xf32>
    %82 = tpu.matmul %80, %81, %cst_45 {dimension_numbers = #tpu.dot_dimension_numbers<[1], [0], [0], [1], [0, 0, 1, 1], [], []>} : vector<16x128xbf16>, vector<128x32xbf16>, vector<16x32xf32> -> vector<16x32xf32>
    %c0_46 = arith.constant 0 : index
    %c0_47 = arith.constant 0 : index
    %83 = vector.load %arg15[%c0_46, %c0_47] : memref<1x32xf32, #tpu.memory_space<vmem>>, vector<1x32xf32>
    %84 = vector.broadcast %83 : vector<1x32xf32> to vector<16x32xf32>
    %85 = arith.addf %82, %84 : vector<16x32xf32>
    %86 = arith.addf %85, %71 : vector<16x32xf32>
    %c0_48 = arith.constant 0 : index
    %c0_49 = arith.constant 0 : index
    %87 = vector.load %arg16[%c0_48, %c0_49] : memref<1x32xf32, #tpu.memory_space<vmem>>, vector<1x32xf32>
    %c0_50 = arith.constant 0 : index
    %c0_51 = arith.constant 0 : index
    %88 = vector.load %arg17[%c0_50, %c0_51] : memref<1x32xf32, #tpu.memory_space<vmem>>, vector<1x32xf32>
    %cst_52 = arith.constant dense<0.000000e+00> : vector<16xf32>
    %89 = vector.multi_reduction <add>, %86, %cst_52 [1] : vector<16x32xf32> to vector<16xf32>
    %90 = vector.shape_cast %89 : vector<16xf32> to vector<16x1xf32>
    %cst_53 = arith.constant 3.200000e+01 : f32
    %91 = vector.broadcast %cst_53 : f32 to vector<16x1xf32>
    %92 = arith.divf %90, %91 : vector<16x1xf32>
    %93 = vector.broadcast %92 : vector<16x1xf32> to vector<16x32xf32>
    %94 = arith.subf %86, %93 : vector<16x32xf32>
    %95 = arith.mulf %94, %94 : vector<16x32xf32>
    %cst_54 = arith.constant dense<0.000000e+00> : vector<16xf32>
    %96 = vector.multi_reduction <add>, %95, %cst_54 [1] : vector<16x32xf32> to vector<16xf32>
    %97 = vector.shape_cast %96 : vector<16xf32> to vector<16x1xf32>
    %cst_55 = arith.constant 3.200000e+01 : f32
    %98 = vector.broadcast %cst_55 : f32 to vector<16x1xf32>
    %99 = arith.divf %97, %98 : vector<16x1xf32>
    %100 = vector.broadcast %92 : vector<16x1xf32> to vector<16x32xf32>
    %101 = arith.subf %86, %100 : vector<16x32xf32>
    %cst_56 = arith.constant 9.99999974E-6 : f32
    %102 = vector.broadcast %cst_56 : f32 to vector<16x1xf32>
    %103 = arith.addf %99, %102 : vector<16x1xf32>
    %104 = math.rsqrt %103 : vector<16x1xf32>
    %105 = vector.broadcast %104 : vector<16x1xf32> to vector<16x32xf32>
    %106 = arith.mulf %101, %105 : vector<16x32xf32>
    %107 = vector.broadcast %87 : vector<1x32xf32> to vector<16x32xf32>
    %108 = arith.mulf %106, %107 : vector<16x32xf32>
    %109 = vector.broadcast %88 : vector<1x32xf32> to vector<16x32xf32>
    %110 = arith.addf %108, %109 : vector<16x32xf32>
    %111 = arith.truncf %110 : vector<16x32xf32> to vector<16x32xbf16>
    %c0_57 = arith.constant 0 : index
    %c0_58 = arith.constant 0 : index
    %112 = vector.load %arg18[%c0_57, %c0_58] : memref<32x32xbf16, #tpu.memory_space<vmem>>, vector<32x32xbf16>
    %cst_59 = arith.constant dense<0.000000e+00> : vector<16x32xf32>
    %113 = tpu.matmul %111, %112, %cst_59 {dimension_numbers = #tpu.dot_dimension_numbers<[1], [0], [0], [1], [0, 0, 1, 1], [], []>} : vector<16x32xbf16>, vector<32x32xbf16>, vector<16x32xf32> -> vector<16x32xf32>
    %c0_60 = arith.constant 0 : index
    %c0_61 = arith.constant 0 : index
    %114 = vector.load %arg19[%c0_60, %c0_61] : memref<32x32xbf16, #tpu.memory_space<vmem>>, vector<32x32xbf16>
    %cst_62 = arith.constant dense<0.000000e+00> : vector<16x32xf32>
    %115 = tpu.matmul %111, %114, %cst_62 {dimension_numbers = #tpu.dot_dimension_numbers<[1], [0], [0], [1], [0, 0, 1, 1], [], []>} : vector<16x32xbf16>, vector<32x32xbf16>, vector<16x32xf32> -> vector<16x32xf32>
    %c0_63 = arith.constant 0 : index
    %c0_64 = arith.constant 0 : index
    %116 = vector.load %arg20[%c0_63, %c0_64] : memref<32x32xbf16, #tpu.memory_space<vmem>>, vector<32x32xbf16>
    %cst_65 = arith.constant dense<0.000000e+00> : vector<16x32xf32>
    %117 = tpu.matmul %111, %116, %cst_65 {dimension_numbers = #tpu.dot_dimension_numbers<[1], [0], [0], [1], [0, 0, 1, 1], [], []>} : vector<16x32xbf16>, vector<32x32xbf16>, vector<16x32xf32> -> vector<16x32xf32>
    %118 = tpu.concatenate %115, %115, %115, %115 in 0 : vector<16x32xf32>, vector<16x32xf32>, vector<16x32xf32>, vector<16x32xf32> -> vector<64x32xf32>
    %119 = arith.mulf %118, %10 : vector<64x32xf32>
    %120 = arith.truncf %119 : vector<64x32xf32> to vector<64x32xbf16>
    %121 = arith.truncf %113 : vector<16x32xf32> to vector<16x32xbf16>
    "tpu.trace_start"() <{level = 10 : i32, message = "re,ce->rc"}> : () -> ()
    %cst_66 = arith.constant dense<0.000000e+00> : vector<64x16xf32>
    %122 = tpu.matmul %120, %121, %cst_66 {dimension_numbers = #tpu.dot_dimension_numbers<[1], [1], [0], [0], [0, 0, 1, 0], [], []>} : vector<64x32xbf16>, vector<16x32xbf16>, vector<64x16xf32> -> vector<64x16xf32>
    "tpu.trace_stop"() : () -> ()
    %123 = arith.addf %122, %11 : vector<64x16xf32>
    %cst_67 = arith.constant dense<0xFF800000> : vector<64xf32>
    %124 = vector.multi_reduction <maximumf>, %123, %cst_67 [1] : vector<64x16xf32> to vector<64xf32>
    %125 = vector.shape_cast %124 : vector<64xf32> to vector<64x1xf32>
    %126 = vector.broadcast %125 : vector<64x1xf32> to vector<64x16xf32>
    %127 = arith.subf %123, %126 : vector<64x16xf32>
    %128 = math.exp %127 : vector<64x16xf32>
    %cst_68 = arith.constant dense<0.000000e+00> : vector<64xf32>
    %129 = vector.multi_reduction <add>, %128, %cst_68 [1] : vector<64x16xf32> to vector<64xf32>
    %130 = vector.shape_cast %129 : vector<64xf32> to vector<64x1xf32>
    %131 = tpu.reciprocal %130 {approx = true} : vector<64x1xf32> -> vector<64x1xf32>
    %132 = vector.broadcast %131 : vector<64x1xf32> to vector<64x16xf32>
    %133 = arith.mulf %128, %132 : vector<64x16xf32>
    %134 = arith.truncf %133 : vector<64x16xf32> to vector<64x16xbf16>
    %135 = arith.truncf %117 : vector<16x32xf32> to vector<16x32xbf16>
    "tpu.trace_start"() <{level = 10 : i32, message = "rc,ce->re"}> : () -> ()
    %cst_69 = arith.constant dense<0.000000e+00> : vector<64x32xf32>
    %136 = tpu.matmul %134, %135, %cst_69 {dimension_numbers = #tpu.dot_dimension_numbers<[1], [0], [0], [1], [0, 0, 1, 1], [], []>} : vector<64x16xbf16>, vector<16x32xbf16>, vector<64x32xf32> -> vector<64x32xf32>
    "tpu.trace_stop"() : () -> ()
    %137 = arith.mulf %136, %10 : vector<64x32xf32>
    %138 = vector.shape_cast %137 : vector<64x32xf32> to vector<4x16x32xf32>
    %cst_70 = arith.constant dense<0.000000e+00> : vector<16x32xf32>
    %139 = vector.multi_reduction <add>, %138, %cst_70 [0] : vector<4x16x32xf32> to vector<16x32xf32>
    %140 = arith.truncf %139 : vector<16x32xf32> to vector<16x32xbf16>
    %c0_71 = arith.constant 0 : index
    %c0_72 = arith.constant 0 : index
    %141 = vector.load %arg21[%c0_71, %c0_72] : memref<32x32xbf16, #tpu.memory_space<vmem>>, vector<32x32xbf16>
    %cst_73 = arith.constant dense<0.000000e+00> : vector<16x32xf32>
    %142 = tpu.matmul %140, %141, %cst_73 {dimension_numbers = #tpu.dot_dimension_numbers<[1], [0], [0], [1], [0, 0, 1, 1], [], []>} : vector<16x32xbf16>, vector<32x32xbf16>, vector<16x32xf32> -> vector<16x32xf32>
    %c0_74 = arith.constant 0 : index
    %c0_75 = arith.constant 0 : index
    %143 = vector.load %arg22[%c0_74, %c0_75] : memref<1x32xf32, #tpu.memory_space<vmem>>, vector<1x32xf32>
    %144 = vector.broadcast %143 : vector<1x32xf32> to vector<16x32xf32>
    %145 = arith.addf %142, %144 : vector<16x32xf32>
    %146 = arith.addf %145, %110 : vector<16x32xf32>
    %c0_76 = arith.constant 0 : index
    %c0_77 = arith.constant 0 : index
    %147 = vector.load %arg23[%c0_76, %c0_77] : memref<1x32xf32, #tpu.memory_space<vmem>>, vector<1x32xf32>
    %c0_78 = arith.constant 0 : index
    %c0_79 = arith.constant 0 : index
    %148 = vector.load %arg24[%c0_78, %c0_79] : memref<1x32xf32, #tpu.memory_space<vmem>>, vector<1x32xf32>
    %cst_80 = arith.constant dense<0.000000e+00> : vector<16xf32>
    %149 = vector.multi_reduction <add>, %146, %cst_80 [1] : vector<16x32xf32> to vector<16xf32>
    %150 = vector.shape_cast %149 : vector<16xf32> to vector<16x1xf32>
    %cst_81 = arith.constant 3.200000e+01 : f32
    %151 = vector.broadcast %cst_81 : f32 to vector<16x1xf32>
    %152 = arith.divf %150, %151 : vector<16x1xf32>
    %153 = vector.broadcast %152 : vector<16x1xf32> to vector<16x32xf32>
    %154 = arith.subf %146, %153 : vector<16x32xf32>
    %155 = arith.mulf %154, %154 : vector<16x32xf32>
    %cst_82 = arith.constant dense<0.000000e+00> : vector<16xf32>
    %156 = vector.multi_reduction <add>, %155, %cst_82 [1] : vector<16x32xf32> to vector<16xf32>
    %157 = vector.shape_cast %156 : vector<16xf32> to vector<16x1xf32>
    %cst_83 = arith.constant 3.200000e+01 : f32
    %158 = vector.broadcast %cst_83 : f32 to vector<16x1xf32>
    %159 = arith.divf %157, %158 : vector<16x1xf32>
    %160 = vector.broadcast %152 : vector<16x1xf32> to vector<16x32xf32>
    %161 = arith.subf %146, %160 : vector<16x32xf32>
    %cst_84 = arith.constant 9.99999974E-6 : f32
    %162 = vector.broadcast %cst_84 : f32 to vector<16x1xf32>
    %163 = arith.addf %159, %162 : vector<16x1xf32>
    %164 = math.rsqrt %163 : vector<16x1xf32>
    %165 = vector.broadcast %164 : vector<16x1xf32> to vector<16x32xf32>
    %166 = arith.mulf %161, %165 : vector<16x32xf32>
    %167 = vector.broadcast %147 : vector<1x32xf32> to vector<16x32xf32>
    %168 = arith.mulf %166, %167 : vector<16x32xf32>
    %169 = vector.broadcast %148 : vector<1x32xf32> to vector<16x32xf32>
    %170 = arith.addf %168, %169 : vector<16x32xf32>
    %171 = arith.truncf %170 : vector<16x32xf32> to vector<16x32xbf16>
    %c0_85 = arith.constant 0 : index
    %c0_86 = arith.constant 0 : index
    %172 = vector.load %arg25[%c0_85, %c0_86] : memref<32x128xbf16, #tpu.memory_space<vmem>>, vector<32x128xbf16>
    %cst_87 = arith.constant dense<0.000000e+00> : vector<16x128xf32>
    %173 = tpu.matmul %171, %172, %cst_87 {dimension_numbers = #tpu.dot_dimension_numbers<[1], [0], [0], [1], [0, 0, 1, 1], [], []>} : vector<16x32xbf16>, vector<32x128xbf16>, vector<16x128xf32> -> vector<16x128xf32>
    %c0_88 = arith.constant 0 : index
    %c0_89 = arith.constant 0 : index
    %174 = vector.load %arg26[%c0_88, %c0_89] : memref<1x128xf32, #tpu.memory_space<vmem>>, vector<1x128xf32>
    %175 = vector.broadcast %174 : vector<1x128xf32> to vector<16x128xf32>
    %176 = arith.addf %173, %175 : vector<16x128xf32>
    %cst_90 = arith.constant 0.000000e+00 : f32
    %177 = vector.broadcast %cst_90 : f32 to vector<16x128xf32>
    %178 = arith.maximumf %176, %177 : vector<16x128xf32>
    %179 = arith.truncf %178 : vector<16x128xf32> to vector<16x128xbf16>
    %c0_91 = arith.constant 0 : index
    %c0_92 = arith.constant 0 : index
    %180 = vector.load %arg27[%c0_91, %c0_92] : memref<128x32xbf16, #tpu.memory_space<vmem>>, vector<128x32xbf16>
    %cst_93 = arith.constant dense<0.000000e+00> : vector<16x32xf32>
    %181 = tpu.matmul %179, %180, %cst_93 {dimension_numbers = #tpu.dot_dimension_numbers<[1], [0], [0], [1], [0, 0, 1, 1], [], []>} : vector<16x128xbf16>, vector<128x32xbf16>, vector<16x32xf32> -> vector<16x32xf32>
    %c0_94 = arith.constant 0 : index
    %c0_95 = arith.constant 0 : index
    %182 = vector.load %arg28[%c0_94, %c0_95] : memref<1x32xf32, #tpu.memory_space<vmem>>, vector<1x32xf32>
    %183 = vector.broadcast %182 : vector<1x32xf32> to vector<16x32xf32>
    %184 = arith.addf %181, %183 : vector<16x32xf32>
    %185 = arith.addf %184, %170 : vector<16x32xf32>
    %c0_96 = arith.constant 0 : index
    %c0_97 = arith.constant 0 : index
    %186 = vector.load %arg29[%c0_96, %c0_97] : memref<1x32xf32, #tpu.memory_space<vmem>>, vector<1x32xf32>
    %c0_98 = arith.constant 0 : index
    %c0_99 = arith.constant 0 : index
    %187 = vector.load %arg30[%c0_98, %c0_99] : memref<1x32xf32, #tpu.memory_space<vmem>>, vector<1x32xf32>
    %cst_100 = arith.constant dense<0.000000e+00> : vector<16xf32>
    %188 = vector.multi_reduction <add>, %185, %cst_100 [1] : vector<16x32xf32> to vector<16xf32>
    %189 = vector.shape_cast %188 : vector<16xf32> to vector<16x1xf32>
    %cst_101 = arith.constant 3.200000e+01 : f32
    %190 = vector.broadcast %cst_101 : f32 to vector<16x1xf32>
    %191 = arith.divf %189, %190 : vector<16x1xf32>
    %192 = vector.broadcast %191 : vector<16x1xf32> to vector<16x32xf32>
    %193 = arith.subf %185, %192 : vector<16x32xf32>
    %194 = arith.mulf %193, %193 : vector<16x32xf32>
    %cst_102 = arith.constant dense<0.000000e+00> : vector<16xf32>
    %195 = vector.multi_reduction <add>, %194, %cst_102 [1] : vector<16x32xf32> to vector<16xf32>
    %196 = vector.shape_cast %195 : vector<16xf32> to vector<16x1xf32>
    %cst_103 = arith.constant 3.200000e+01 : f32
    %197 = vector.broadcast %cst_103 : f32 to vector<16x1xf32>
    %198 = arith.divf %196, %197 : vector<16x1xf32>
    %199 = vector.broadcast %191 : vector<16x1xf32> to vector<16x32xf32>
    %200 = arith.subf %185, %199 : vector<16x32xf32>
    %cst_104 = arith.constant 9.99999974E-6 : f32
    %201 = vector.broadcast %cst_104 : f32 to vector<16x1xf32>
    %202 = arith.addf %198, %201 : vector<16x1xf32>
    %203 = math.rsqrt %202 : vector<16x1xf32>
    %204 = vector.broadcast %203 : vector<16x1xf32> to vector<16x32xf32>
    %205 = arith.mulf %200, %204 : vector<16x32xf32>
    %206 = vector.broadcast %186 : vector<1x32xf32> to vector<16x32xf32>
    %207 = arith.mulf %205, %206 : vector<16x32xf32>
    %208 = vector.broadcast %187 : vector<1x32xf32> to vector<16x32xf32>
    %209 = arith.addf %207, %208 : vector<16x32xf32>
    %210 = vector.shape_cast %209 : vector<16x32xf32> to vector<2x8x32xf32>
    %cst_105 = arith.constant dense<0xFF800000> : vector<2x32xf32>
    %211 = vector.multi_reduction <maximumf>, %210, %cst_105 [1] : vector<2x8x32xf32> to vector<2x32xf32>
    %212 = arith.truncf %211 : vector<2x32xf32> to vector<2x32xbf16>
    %c0_106 = arith.constant 0 : index
    %c0_107 = arith.constant 0 : index
    %213 = vector.load %arg31[%c0_106, %c0_107] : memref<32x5xbf16, #tpu.memory_space<vmem>>, vector<32x5xbf16>
    %cst_108 = arith.constant dense<0.000000e+00> : vector<2x5xf32>
    %214 = tpu.matmul %212, %213, %cst_108 {dimension_numbers = #tpu.dot_dimension_numbers<[1], [0], [0], [1], [0, 0, 1, 1], [], []>} : vector<2x32xbf16>, vector<32x5xbf16>, vector<2x5xf32> -> vector<2x5xf32>
    %c0_109 = arith.constant 0 : index
    %c0_110 = arith.constant 0 : index
    %215 = vector.load %arg32[%c0_109, %c0_110] : memref<1x5xf32, #tpu.memory_space<vmem>>, vector<1x5xf32>
    %216 = vector.broadcast %215 : vector<1x5xf32> to vector<2x5xf32>
    %217 = arith.addf %214, %216 : vector<2x5xf32>
    %cst_111 = arith.constant dense<0xFF800000> : vector<2xf32>
    %218 = vector.multi_reduction <maximumf>, %217, %cst_111 [1] : vector<2x5xf32> to vector<2xf32>
    %219 = vector.shape_cast %218 : vector<2xf32> to vector<2x1xf32>
    %220 = vector.broadcast %219 : vector<2x1xf32> to vector<2x5xf32>
    %221 = arith.subf %217, %220 : vector<2x5xf32>
    %222 = math.exp %221 : vector<2x5xf32>
    %cst_112 = arith.constant dense<0.000000e+00> : vector<2xf32>
    %223 = vector.multi_reduction <add>, %222, %cst_112 [1] : vector<2x5xf32> to vector<2xf32>
    %224 = vector.shape_cast %223 : vector<2xf32> to vector<2x1xf32>
    %225 = math.log %224 : vector<2x1xf32>
    %226 = vector.broadcast %225 : vector<2x1xf32> to vector<2x5xf32>
    %227 = arith.subf %221, %226 : vector<2x5xf32>
    %c0_113 = arith.constant 0 : index
    %c0_114 = arith.constant 0 : index
    %228 = vector.load %arg33[%c0_113, %c0_114] : memref<2x5xf32, #tpu.memory_space<vmem>>, vector<2x5xf32>
    tpu.vector_store %arg33[%c0_113, %c0_114], %227 {strides = array<i32>} : memref<2x5xf32, #tpu.memory_space<vmem>>, vector<2x5xf32>,
    return
  }
}

</mosaic_0001>

<llo_original>
// kernel: tpu_custom_call.1
$region0: #{tpu_custom_call.1}
  #allocation0 [shape = 'u32[]', space=smem, size = 0x4, offset = 0x4, fixed_abs, tag = 'smem constant byte address 0x4 - core index']
  #allocation1 [shape = 'u32[144,128]{1,0:T(1,128)}', space=vmem, size = 0x12000, scoped, tag = 'internal scratch']
  %s0 = inlined_call_operand.smem [shape: u32[34], index: -1, kind: input, shape index: {}]
  %s1 = sld [smem:[%s0]]
  %s2 = scalar_lea.smem %s0, 1
  %s3 = sld [smem:[%s2]]
  %s4 = scalar_lea.smem %s0, 2
  %s5 = sld [smem:[%s4]]
  %s6 = scalar_lea.smem %s0, 3
  %s7 = sld [smem:[%s6]]
  %s8 = scalar_lea.smem %s0, 4
  %s9 = sld [smem:[%s8]]
  %s10 = scalar_lea.smem %s0, 5
  %s11 = sld [smem:[%s10]]
  %s12 = scalar_lea.smem %s0, 6
  %s13 = sld [smem:[%s12]]
  %s14 = scalar_lea.smem %s0, 7
  %s15 = sld [smem:[%s14]]
  %s16 = scalar_lea.smem %s0, 8
  %s17 = sld [smem:[%s16]]
  %s18 = scalar_lea.smem %s0, 9
  %s19 = sld [smem:[%s18]]
  %s20 = scalar_lea.smem %s0, 10
  %s21 = sld [smem:[%s20]]
  %s22 = scalar_lea.smem %s0, 11
  %s23 = sld [smem:[%s22]]
  %s24 = scalar_lea.smem %s0, 12
  %s25 = sld [smem:[%s24]]
  %s26 = scalar_lea.smem %s0, 13
  %s27 = sld [smem:[%s26]]
  %s28 = scalar_lea.smem %s0, 14
  %s29 = sld [smem:[%s28]]
  %s30 = scalar_lea.smem %s0, 15
  %s31 = sld [smem:[%s30]]
  %s32 = scalar_lea.smem %s0, 16
  %s33 = sld [smem:[%s32]]
  %s34 = scalar_lea.smem %s0, 17
  %s35 = sld [smem:[%s34]]
  %s36 = scalar_lea.smem %s0, 18
  %s37 = sld [smem:[%s36]]
  %s38 = scalar_lea.smem %s0, 19
  %s39 = sld [smem:[%s38]]
  %s40 = scalar_lea.smem %s0, 20
  %s41 = sld [smem:[%s40]]
  %s42 = scalar_lea.smem %s0, 21
  %s43 = sld [smem:[%s42]]
  %s44 = scalar_lea.smem %s0, 22
  %s45 = sld [smem:[%s44]]
  %s46 = scalar_lea.smem %s0, 23
  %s47 = sld [smem:[%s46]]
  %s48 = scalar_lea.smem %s0, 24
  %s49 = sld [smem:[%s48]]
  %s50 = scalar_lea.smem %s0, 25
  %s51 = sld [smem:[%s50]]
  %s52 = scalar_lea.smem %s0, 26
  %s53 = sld [smem:[%s52]]
  %s54 = scalar_lea.smem %s0, 27
  %s55 = sld [smem:[%s54]]
  %s56 = scalar_lea.smem %s0, 28
  %s57 = sld [smem:[%s56]]
  %s58 = scalar_lea.smem %s0, 29
  %s59 = sld [smem:[%s58]]
  %s60 = scalar_lea.smem %s0, 30
  %s61 = sld [smem:[%s60]]
  %s62 = scalar_lea.smem %s0, 31
  %s63 = sld [smem:[%s62]]
  %s64 = scalar_lea.smem %s0, 32
  %s65 = sld [smem:[%s64]]
  %s66 = scalar_lea.smem %s0, 33
  %s67 = sld [smem:[%s66]]
  %s68 = sld [smem:[#allocation0]]
  $region142: #{tpu_custom_call.1} parent=0
    _
  %s70 = ssub.s32 1, %s68
  %s71 = scalar_select 0, %s70, %s68
  $region1: #{tpu_custom_call.1} parent=0
    #allocation2 [shape = 'u8[1024]{0}', space=vmem, size = 0x400, scoped, tag = 'output window, operand 0, single buffered']
    #allocation3 [shape = 's32[1]{0}', space=sflag, size = 0x4, scoped, tag = 'scoped memory for tpu_custom_call.1']
    %72 = vsyncpa [#allocation3], 0
    // Predicated region
    $region2: #{tpu_custom_call.1} parent=1 // pred_check
      _
    $region3: #{tpu_custom_call.1} parent=1 // pred_check_branch
      %74 = sbr.rel (0) target = $region5
    $region4: #{tpu_custom_call.1} parent=1 // pred_region
      _
    $region5: #{tpu_custom_call.1} parent=1 // pred_fallthru
      _
    // Predicated region
    $region6: #{tpu_custom_call.1} parent=1 // pred_check
      _
    $region7: #{tpu_custom_call.1} parent=1 // pred_check_branch
      %76 = sbr.rel (0) target = $region9
    $region8: #{tpu_custom_call.1} parent=1 // pred_region
      _
    $region9: #{tpu_custom_call.1} parent=1 // pred_fallthru
      _
    // Predicated region
    $region10: #{tpu_custom_call.1} parent=1 // pred_check
      _
    $region11: #{tpu_custom_call.1} parent=1 // pred_check_branch
      %78 = sbr.rel (0) target = $region13
    $region12: #{tpu_custom_call.1} parent=1 // pred_region
      _
    $region13: #{tpu_custom_call.1} parent=1 // pred_fallthru
      _
    // Predicated region
    $region14: #{tpu_custom_call.1} parent=1 // pred_check
      _
    $region15: #{tpu_custom_call.1} parent=1 // pred_check_branch
      %80 = sbr.rel (0) target = $region17
    $region16: #{tpu_custom_call.1} parent=1 // pred_region
      _
    $region17: #{tpu_custom_call.1} parent=1 // pred_fallthru
      _
    // Predicated region
    $region18: #{tpu_custom_call.1} parent=1 // pred_check
      _
    $region19: #{tpu_custom_call.1} parent=1 // pred_check_branch
      %82 = sbr.rel (0) target = $region21
    $region20: #{tpu_custom_call.1} parent=1 // pred_region
      _
    $region21: #{tpu_custom_call.1} parent=1 // pred_fallthru
      _
    // Predicated region
    $region22: #{tpu_custom_call.1} parent=1 // pred_check
      _
    $region23: #{tpu_custom_call.1} parent=1 // pred_check_branch
      %84 = sbr.rel (0) target = $region25
    $region24: #{tpu_custom_call.1} parent=1 // pred_region
      _
    $region25: #{tpu_custom_call.1} parent=1 // pred_fallthru
      _
    // Predicated region
    $region26: #{tpu_custom_call.1} parent=1 // pred_check
      _
    $region27: #{tpu_custom_call.1} parent=1 // pred_check_branch
      %86 = sbr.rel (0) target = $region29
    $region28: #{tpu_custom_call.1} parent=1 // pred_region
      _
    $region29: #{tpu_custom_call.1} parent=1 // pred_fallthru
      _
    // Predicated region
    $region30: #{tpu_custom_call.1} parent=1 // pred_check
      _
    $region31: #{tpu_custom_call.1} parent=1 // pred_check_branch
      %88 = sbr.rel (0) target = $region33
    $region32: #{tpu_custom_call.1} parent=1 // pred_region
      _
    $region33: #{tpu_custom_call.1} parent=1 // pred_fallthru
      _
    // Predicated region
    $region34: #{tpu_custom_call.1} parent=1 // pred_check
      _
    $region35: #{tpu_custom_call.1} parent=1 // pred_check_branch
      %90 = sbr.rel (0) target = $region37
    $region36: #{tpu_custom_call.1} parent=1 // pred_region
      _
    $region37: #{tpu_custom_call.1} parent=1 // pred_fallthru
      _
    // Predicated region
    $region38: #{tpu_custom_call.1} parent=1 // pred_check
      _
    $region39: #{tpu_custom_call.1} parent=1 // pred_check_branch
      %92 = sbr.rel (0) target = $region41
    $region40: #{tpu_custom_call.1} parent=1 // pred_region
      _
    $region41: #{tpu_custom_call.1} parent=1 // pred_fallthru
      _
    // Predicated region
    $region42: #{tpu_custom_call.1} parent=1 // pred_check
      _
    $region43: #{tpu_custom_call.1} parent=1 // pred_check_branch
      %94 = sbr.rel (0) target = $region45
    $region44: #{tpu_custom_call.1} parent=1 // pred_region
      _
    $region45: #{tpu_custom_call.1} parent=1 // pred_fallthru
      _
    // Predicated region
    $region46: #{tpu_custom_call.1} parent=1 // pred_check
      _
    $region47: #{tpu_custom_call.1} parent=1 // pred_check_branch
      %96 = sbr.rel (0) target = $region49
    $region48: #{tpu_custom_call.1} parent=1 // pred_region
      _
    $region49: #{tpu_custom_call.1} parent=1 // pred_fallthru
      _
    // Predicated region
    $region50: #{tpu_custom_call.1} parent=1 // pred_check
      _
    $region51: #{tpu_custom_call.1} parent=1 // pred_check_branch
      %98 = sbr.rel (0) target = $region53
    $region52: #{tpu_custom_call.1} parent=1 // pred_region
      _
    $region53: #{tpu_custom_call.1} parent=1 // pred_fallthru
      _
    // Predicated region
    $region54: #{tpu_custom_call.1} parent=1 // pred_check
      _
    $region55: #{tpu_custom_call.1} parent=1 // pred_check_branch
      %100 = sbr.rel (0) target = $region57
    $region56: #{tpu_custom_call.1} parent=1 // pred_region
      _
    $region57: #{tpu_custom_call.1} parent=1 // pred_fallthru
      _
    // Predicated region
    $region58: #{tpu_custom_call.1} parent=1 // pred_check
      _
    $region59: #{tpu_custom_call.1} parent=1 // pred_check_branch
      %102 = sbr.rel (0) target = $region61
    $region60: #{tpu_custom_call.1} parent=1 // pred_region
      _
    $region61: #{tpu_custom_call.1} parent=1 // pred_fallthru
      _
    // Predicated region
    $region62: #{tpu_custom_call.1} parent=1 // pred_check
      _
    $region63: #{tpu_custom_call.1} parent=1 // pred_check_branch
      %104 = sbr.rel (0) target = $region65
    $region64: #{tpu_custom_call.1} parent=1 // pred_region
      _
    $region65: #{tpu_custom_call.1} parent=1 // pred_fallthru
      _
    // Predicated region
    $region66: #{tpu_custom_call.1} parent=1 // pred_check
      _
    $region67: #{tpu_custom_call.1} parent=1 // pred_check_branch
      %106 = sbr.rel (0) target = $region69
    $region68: #{tpu_custom_call.1} parent=1 // pred_region
      _
    $region69: #{tpu_custom_call.1} parent=1 // pred_fallthru
      _
    // Predicated region
    $region70: #{tpu_custom_call.1} parent=1 // pred_check
      _
    $region71: #{tpu_custom_call.1} parent=1 // pred_check_branch
      %108 = sbr.rel (0) target = $region73
    $region72: #{tpu_custom_call.1} parent=1 // pred_region
      _
    $region73: #{tpu_custom_call.1} parent=1 // pred_fallthru
      _
    // Predicated region
    $region74: #{tpu_custom_call.1} parent=1 // pred_check
      _
    $region75: #{tpu_custom_call.1} parent=1 // pred_check_branch
      %110 = sbr.rel (0) target = $region77
    $region76: #{tpu_custom_call.1} parent=1 // pred_region
      _
    $region77: #{tpu_custom_call.1} parent=1 // pred_fallthru
      _
    // Predicated region
    $region78: #{tpu_custom_call.1} parent=1 // pred_check
      _
    $region79: #{tpu_custom_call.1} parent=1 // pred_check_branch
      %112 = sbr.rel (0) target = $region81
    $region80: #{tpu_custom_call.1} parent=1 // pred_region
      _
    $region81: #{tpu_custom_call.1} parent=1 // pred_fallthru
      _
    // Predicated region
    $region82: #{tpu_custom_call.1} parent=1 // pred_check
      _
    $region83: #{tpu_custom_call.1} parent=1 // pred_check_branch
      %114 = sbr.rel (0) target = $region85
    $region84: #{tpu_custom_call.1} parent=1 // pred_region
      _
    $region85: #{tpu_custom_call.1} parent=1 // pred_fallthru
      _
    // Predicated region
    $region86: #{tpu_custom_call.1} parent=1 // pred_check
      _
    $region87: #{tpu_custom_call.1} parent=1 // pred_check_branch
      %116 = sbr.rel (0) target = $region89
    $region88: #{tpu_custom_call.1} parent=1 // pred_region
      _
    $region89: #{tpu_custom_call.1} parent=1 // pred_fallthru
      _
    // Predicated region
    $region90: #{tpu_custom_call.1} parent=1 // pred_check
      _
    $region91: #{tpu_custom_call.1} parent=1 // pred_check_branch
      %118 = sbr.rel (0) target = $region93
    $region92: #{tpu_custom_call.1} parent=1 // pred_region
      _
    $region93: #{tpu_custom_call.1} parent=1 // pred_fallthru
      _
    // Predicated region
    $region94: #{tpu_custom_call.1} parent=1 // pred_check
      _
    $region95: #{tpu_custom_call.1} parent=1 // pred_check_branch
      %120 = sbr.rel (0) target = $region97
    $region96: #{tpu_custom_call.1} parent=1 // pred_region
      _
    $region97: #{tpu_custom_call.1} parent=1 // pred_fallthru
      _
    // Predicated region
    $region98: #{tpu_custom_call.1} parent=1 // pred_check
      _
    $region99: #{tpu_custom_call.1} parent=1 // pred_check_branch
      %122 = sbr.rel (0) target = $region101
    $region100: #{tpu_custom_call.1} parent=1 // pred_region
      _
    $region101: #{tpu_custom_call.1} parent=1 // pred_fallthru
      _
    // Predicated region
    $region102: #{tpu_custom_call.1} parent=1 // pred_check
      _
    $region103: #{tpu_custom_call.1} parent=1 // pred_check_branch
      %124 = sbr.rel (0) target = $region105
    $region104: #{tpu_custom_call.1} parent=1 // pred_region
      _
    $region105: #{tpu_custom_call.1} parent=1 // pred_fallthru
      _
    // Predicated region
    $region106: #{tpu_custom_call.1} parent=1 // pred_check
      _
    $region107: #{tpu_custom_call.1} parent=1 // pred_check_branch
      %126 = sbr.rel (0) target = $region109
    $region108: #{tpu_custom_call.1} parent=1 // pred_region
      _
    $region109: #{tpu_custom_call.1} parent=1 // pred_fallthru
      _
    // Predicated region
    $region110: #{tpu_custom_call.1} parent=1 // pred_check
      _
    $region111: #{tpu_custom_call.1} parent=1 // pred_check_branch
      %128 = sbr.rel (0) target = $region113
    $region112: #{tpu_custom_call.1} parent=1 // pred_region
      _
    $region113: #{tpu_custom_call.1} parent=1 // pred_fallthru
      _
    // Predicated region
    $region114: #{tpu_custom_call.1} parent=1 // pred_check
      _
    $region115: #{tpu_custom_call.1} parent=1 // pred_check_branch
      %130 = sbr.rel (0) target = $region117
    $region116: #{tpu_custom_call.1} parent=1 // pred_region
      _
    $region117: #{tpu_custom_call.1} parent=1 // pred_fallthru
      _
    // Predicated region
    $region118: #{tpu_custom_call.1} parent=1 // pred_check
      _
    $region119: #{tpu_custom_call.1} parent=1 // pred_check_branch
      %132 = sbr.rel (0) target = $region121
    $region120: #{tpu_custom_call.1} parent=1 // pred_region
      _
    $region121: #{tpu_custom_call.1} parent=1 // pred_fallthru
      _
    // Predicated region
    $region122: #{tpu_custom_call.1} parent=1 // pred_check
      _
    $region123: #{tpu_custom_call.1} parent=1 // pred_check_branch
      %134 = sbr.rel (0) target = $region125
    $region124: #{tpu_custom_call.1} parent=1 // pred_region
      _
    $region125: #{tpu_custom_call.1} parent=1 // pred_fallthru
      _
    // Predicated region
    $region126: #{tpu_custom_call.1} parent=1 // pred_check
      _
    $region127: #{tpu_custom_call.1} parent=1 // pred_check_branch
      %136 = sbr.rel (0) target = $region129
    $region128: #{tpu_custom_call.1} parent=1 // pred_region
      _
    $region129: #{tpu_custom_call.1} parent=1 // pred_fallthru
      _
    // Predicated region
    $region130: #{tpu_custom_call.1} parent=1 // pred_check
      _
    $region131: #{tpu_custom_call.1} parent=1 // pred_check_branch
      %138 = sbr.rel (0) target = $region133
    $region132: #{tpu_custom_call.1} parent=1 // pred_region
      _
    $region133: #{tpu_custom_call.1} parent=1 // pred_fallthru
      _
    %v140 = vld [vmem:[%s1] sm:$0xff]
    %v141 = vld [vmem:[%s1 + $0x8] sm:$0xff]
    %v142 = vlaneseq
    %v143 = vand.u32 %v142, 127
    %144 = vset.pattern.permute.xlu0 0
    %145 = vperm.xlu0 %144, %v140
    %v146 = vpop.permute.xlu0 %145
    %147 = vset.pattern.permute.xlu0 0
    %148 = vperm.xlu0 %147, %v141
    %v149 = vpop.permute.xlu0 %148
    %vm150 = vcmp.eq.s32.totalorder %v143, %v146
    %vm151 = vcmp.eq.s32.totalorder %v143, %v149
    %v152 = vsel %vm150, 1, 0
    %v153 = vsel %vm151, 1, 0
    %v154 = vcvt.s32.f32 %v152
    %v155 = vcvt.s32.f32 %v153
    %v156 = vld [vmem:[%s3] sm:$0xff]
    %v157 = vld [vmem:[%s3 + $0x8] sm:$0xff]
    %v158 = vld [vmem:[%s3 + $0x10] sm:$0xff]
    %v159 = vld [vmem:[%s3 + $0x18] sm:$0xff]
    %v160 = vld [vmem:[%s3 + $0x20] sm:$0xff]
    %v161 = vld [vmem:[%s3 + $0x28] sm:$0xff]
    %v162 = vld [vmem:[%s3 + $0x30] sm:$0xff]
    %v163 = vld [vmem:[%s3 + $0x38] sm:$0xff]
    %v164 = vld [vmem:[%s3 + $0x40] sm:$0xff]
    %v165 = vld [vmem:[%s3 + $0x48] sm:$0xff]
    %v166 = vld [vmem:[%s3 + $0x50] sm:$0xff]
    %v167 = vld [vmem:[%s3 + $0x58] sm:$0xff]
    %v168 = vld [vmem:[%s3 + $0x60] sm:$0xf]
    %v169 = vld [vmem:[%s5] sm:$0xff]
    %v170 = vld [vmem:[%s5 + $0x8] sm:$0xff]
    %vm171 = vcmask 818176
    %v173 = vsel %vm171, %v154, 0
    %v176 = vsel %vm171, %v155, 0
    %vm178 = vcmask 1043456
    %v180 = vsel %vm178, %v168, 0
    %182 = vmatprep.subr.mxu0 0.0
    %183 = vmatpush1.msra.mxu0 %v156
    %184 = vmatprep.subr.mxu0 0.0
    %185 = vmatpush1.msra.mxu0 %v157
    %186 = vmatprep.subr.mxu0 0.0
    %187 = vmatpush1.msra.mxu0 %v158
    %188 = vmatprep.subr.mxu0 0.0
    %189 = vmatpush1.msra.mxu0 %v159
    %190 = vmatprep.subr.mxu0 0.0
    %191 = vmatpush1.msra.mxu0 %v160
    %192 = vmatprep.subr.mxu0 0.0
    %193 = vmatpush1.msra.mxu0 %v161
    %194 = vmatprep.subr.mxu0 0.0
    %195 = vmatpush1.msra.mxu0 %v162
    %196 = vmatprep.subr.mxu0 0.0
    %197 = vmatpush1.msra.mxu0 %v163
    %198 = vmatprep.subr.mxu0 0.0
    %199 = vmatpush1.msra.mxu0 %v164
    %200 = vmatprep.subr.mxu0 0.0
    %201 = vmatpush1.msra.mxu0 %v165
    %202 = vmatprep.subr.mxu0 0.0
    %203 = vmatpush1.msra.mxu0 %v166
    %204 = vmatprep.subr.mxu0 0.0
    %205 = vmatpush1.msra.mxu0 %v167
    %206 = vmatprep.subr.mxu0 0.0
    %207 = vmatpush1.msra.mxu0 %v180
    %208 = vmatprep.subr.mxu0 0.0
    %209 = vmatpush1.msra.mxu0 0.0
    %210 = vmatprep.subr.mxu0 0.0
    %211 = vmatpush1.msra.mxu0 0.0
    %212 = vmatprep.subr.mxu0 0.0
    %213 = vmatpush1.msra.mxu0 0.0
    %214 = vmatprep.subr.mxu0 0.0
    %215 = vmatpush1.msra.mxu0 0.0
    %216 = vmatprep.subr.mxu0 0.0
    %217 = vmatpush1.msra.mxu0 0.0
    %218 = vmatprep.subr.mxu0 0.0
    %219 = vmatpush1.msra.mxu0 0.0
    %220 = vmatprep.subr.mxu0 0.0
    %221 = vmatpush1.msra.mxu0 0.0
    %222 = vmatprep.subr.mxu0 0.0
    %223 = vmatpush1.msra.mxu0 0.0
    %224 = vmatprep.subr.mxu0 0.0
    %225 = vmatpush1.msra.mxu0 0.0
    %226 = vmatprep.subr.mxu0 0.0
    %227 = vmatpush1.msra.mxu0 0.0
    %228 = vmatprep.subr.mxu0 0.0
    %229 = vmatpush1.msra.mxu0 0.0
    %230 = vmatprep.subr.mxu0 0.0
    %231 = vmatpush1.msra.mxu0 0.0
    %232 = vmatprep.subr.mxu0 0.0
    %233 = vmatpush1.msra.mxu0 0.0
    %234 = vmatprep.subr.mxu0 0.0
    %235 = vmatpush1.msra.mxu0 0.0
    %236 = vmatprep.subr.mxu0 0.0
    %237 = vmatpush1.msra.mxu0 0.0
    %238 = vmatprep.subr.mxu0 0.0
    %239 = vmatpush1.msra.mxu0 0.0
    %240 = vmatprep.subr.mxu0 0.0
    %241 = vmatpush1.msra.mxu0 0.0
    %242 = vmatprep.subr.mxu0 0.0
    %243 = vmatpush1.msra.mxu0 0.0
    %244 = vmatprep.subr.mxu0 0.0
    %245 = vmatpush1.msra.mxu0 0.0
    %246 = vmatprep.mubr.f32.mxu0 0.0
    %247 = vmatmul.mubr.f32.gmra.mrb[0].mxu0 %v173
    %v248 = vpop.f32.mrb[0].mxu0
    %v249 = vadd.f32 %v169, %v248
    %v250 = vpop.f32.mrb[0].mxu0
    %251 = vmatprep.mubr.f32.mxu0 0.0
    %252 = vmatmul.mubr.f32.gmra.mrb[0].mxu0 %v176
    %v253 = vpop.f32.mrb[0].mxu0
    %v254 = vadd.f32 %v170, %v253
    %v255 = vpop.f32.mrb[0].mxu0
    %256 = vdwg.mxu0
    %v257 = vld [vmem:[%s7] sm:$0xff]
    %v258 = vld [vmem:[%s7 + $0x8] sm:$0xff]
    %v259 = vld [vmem:[%s7 + $0x10] sm:$0xff]
    %v260 = vld [vmem:[%s7 + $0x18] sm:$0xff]
    %v261 = vld [vmem:[%s7 + $0x20] sm:$0xff]
    %v262 = vld [vmem:[%s7 + $0x28] sm:$0xff]
    %v263 = vld [vmem:[%s7 + $0x30] sm:$0xff]
    %v264 = vld [vmem:[%s7 + $0x38] sm:$0xff]
    %v265 = vld [vmem:[%s9] sm:$0xff]
    %v266 = vld [vmem:[%s9 + $0x8] sm:$0xff]
    %v267 = vld [vmem:[%s9 + $0x10] sm:$0xff]
    %v268 = vld [vmem:[%s9 + $0x18] sm:$0xff]
    %v269 = vld [vmem:[%s9 + $0x20] sm:$0xff]
    %v270 = vld [vmem:[%s9 + $0x28] sm:$0xff]
    %v271 = vld [vmem:[%s9 + $0x30] sm:$0xff]
    %v272 = vld [vmem:[%s9 + $0x38] sm:$0xff]
    %v273 = vpack.c.bf16 %v254, %v249
    %v274 = vld [vmem:[%s11] sm:$0xf]
    %v275 = vld [vmem:[%s11 + $0x4] sm:$0xf]
    %v276 = vld [vmem:[%s11 + $0x8] sm:$0xf]
    %v277 = vld [vmem:[%s11 + $0xc] sm:$0xf]
    %v282 = vunpack.c.l.b16 %v274
    %v283 = vunpack.c.l.b16 %v275
    %v284 = vunpack.c.l.b16 %v276
    %v285 = vunpack.c.l.b16 %v277
    %v286 = vpack.c.b16 %v283, %v282
    %v287 = vpack.c.b16 %v285, %v284
    %vm290 = vcmask 261120
    %v292 = vsel %vm290, %v273, 0
    %294 = vmatprep.subr.bf16.mxu0 0
    %295 = vmatpush1.bf16.msra.mxu0 %v286
    %296 = vmatprep.subr.bf16.mxu0 0
    %297 = vmatpush1.bf16.msra.mxu0 %v287
    %298 = vmatprep.subr.bf16.mxu0 0
    %299 = vmatpush1.bf16.msra.mxu0 0
    %300 = vmatprep.subr.bf16.mxu0 0
    %301 = vmatpush1.bf16.msra.mxu0 0
    %302 = vmatprep.subr.bf16.mxu0 0
    %303 = vmatpush1.bf16.msra.mxu0 0
    %304 = vmatprep.subr.bf16.mxu0 0
    %305 = vmatpush1.bf16.msra.mxu0 0
    %306 = vmatprep.subr.bf16.mxu0 0
    %307 = vmatpush1.bf16.msra.mxu0 0
    %308 = vmatprep.subr.bf16.mxu0 0
    %309 = vmatpush1.bf16.msra.mxu0 0
    %310 = vmatprep.subr.bf16.mxu0 0
    %311 = vmatpush1.bf16.msra.mxu0 0
    %312 = vmatprep.subr.bf16.mxu0 0
    %313 = vmatpush1.bf16.msra.mxu0 0
    %314 = vmatprep.subr.bf16.mxu0 0
    %315 = vmatpush1.bf16.msra.mxu0 0
    %316 = vmatprep.subr.bf16.mxu0 0
    %317 = vmatpush1.bf16.msra.mxu0 0
    %318 = vmatprep.subr.bf16.mxu0 0
    %319 = vmatpush1.bf16.msra.mxu0 0
    %320 = vmatprep.subr.bf16.mxu0 0
    %321 = vmatpush1.bf16.msra.mxu0 0
    %322 = vmatprep.subr.bf16.mxu0 0
    %323 = vmatpush1.bf16.msra.mxu0 0
    %324 = vmatprep.subr.bf16.mxu0 0
    %325 = vmatpush1.bf16.msra.mxu0 0
    %326 = vmatprep.mubr.bf16.mxu0 0
    %327 = vmatmul.mubr.bf16.gmra.mrb[0].mxu0 %v292
    %v328 = vpop.f32.mrb[0].mxu0
    %v329 = vadd.f32 0.0, %v328
    %v330 = vpop.f32.mrb[0].mxu0
    %v331 = vpop.f32.mrb[0].mxu0
    %v332 = vadd.f32 0.0, %v331
    %v333 = vpop.f32.mrb[0].mxu0
    %334 = vdwg.mxu0
    %v335 = vld [vmem:[%s13] sm:$0xf]
    %v336 = vld [vmem:[%s13 + $0x4] sm:$0xf]
    %v337 = vld [vmem:[%s13 + $0x8] sm:$0xf]
    %v338 = vld [vmem:[%s13 + $0xc] sm:$0xf]
    %v343 = vunpack.c.l.b16 %v335
    %v344 = vunpack.c.l.b16 %v336
    %v345 = vunpack.c.l.b16 %v337
    %v346 = vunpack.c.l.b16 %v338
    %v347 = vpack.c.b16 %v344, %v343
    %v348 = vpack.c.b16 %v346, %v345
    %351 = vmatprep.subr.bf16.mxu0 0
    %352 = vmatpush1.bf16.msra.mxu0 %v347
    %353 = vmatprep.subr.bf16.mxu0 0
    %354 = vmatpush1.bf16.msra.mxu0 %v348
    %355 = vmatprep.subr.bf16.mxu0 0
    %356 = vmatpush1.bf16.msra.mxu0 0
    %357 = vmatprep.subr.bf16.mxu0 0
    %358 = vmatpush1.bf16.msra.mxu0 0
    %359 = vmatprep.subr.bf16.mxu0 0
    %360 = vmatpush1.bf16.msra.mxu0 0
    %361 = vmatprep.subr.bf16.mxu0 0
    %362 = vmatpush1.bf16.msra.mxu0 0
    %363 = vmatprep.subr.bf16.mxu0 0
    %364 = vmatpush1.bf16.msra.mxu0 0
    %365 = vmatprep.subr.bf16.mxu0 0
    %366 = vmatpush1.bf16.msra.mxu0 0
    %367 = vmatprep.subr.bf16.mxu0 0
    %368 = vmatpush1.bf16.msra.mxu0 0
    %369 = vmatprep.subr.bf16.mxu0 0
    %370 = vmatpush1.bf16.msra.mxu0 0
    %371 = vmatprep.subr.bf16.mxu0 0
    %372 = vmatpush1.bf16.msra.mxu0 0
    %373 = vmatprep.subr.bf16.mxu0 0
    %374 = vmatpush1.bf16.msra.mxu0 0
    %375 = vmatprep.subr.bf16.mxu0 0
    %376 = vmatpush1.bf16.msra.mxu0 0
    %377 = vmatprep.subr.bf16.mxu0 0
    %378 = vmatpush1.bf16.msra.mxu0 0
    %379 = vmatprep.subr.bf16.mxu0 0
    %380 = vmatpush1.bf16.msra.mxu0 0
    %381 = vmatprep.subr.bf16.mxu0 0
    %382 = vmatpush1.bf16.msra.mxu0 0
    %383 = vmatprep.mubr.bf16.mxu0 0
    %384 = vmatmul.mubr.bf16.gmra.mrb[0].mxu0 %v292
    %v385 = vpop.f32.mrb[0].mxu0
    %v386 = vadd.f32 0.0, %v385
    %v387 = vpop.f32.mrb[0].mxu0
    %v388 = vpop.f32.mrb[0].mxu0
    %v389 = vadd.f32 0.0, %v388
    %v390 = vpop.f32.mrb[0].mxu0
    %391 = vdwg.mxu0
    %v392 = vld [vmem:[%s15] sm:$0xf]
    %v393 = vld [vmem:[%s15 + $0x4] sm:$0xf]
    %v394 = vld [vmem:[%s15 + $0x8] sm:$0xf]
    %v395 = vld [vmem:[%s15 + $0xc] sm:$0xf]
    %v400 = vunpack.c.l.b16 %v392
    %v401 = vunpack.c.l.b16 %v393
    %v402 = vunpack.c.l.b16 %v394
    %v403 = vunpack.c.l.b16 %v395
    %v404 = vpack.c.b16 %v401, %v400
    %v405 = vpack.c.b16 %v403, %v402
    %408 = vmatprep.subr.bf16.mxu0 0
    %409 = vmatpush1.bf16.msra.mxu0 %v404
    %410 = vmatprep.subr.bf16.mxu0 0
    %411 = vmatpush1.bf16.msra.mxu0 %v405
    %412 = vmatprep.subr.bf16.mxu0 0
    %413 = vmatpush1.bf16.msra.mxu0 0
    %414 = vmatprep.subr.bf16.mxu0 0
    %415 = vmatpush1.bf16.msra.mxu0 0
    %416 = vmatprep.subr.bf16.mxu0 0
    %417 = vmatpush1.bf16.msra.mxu0 0
    %418 = vmatprep.subr.bf16.mxu0 0
    %419 = vmatpush1.bf16.msra.mxu0 0
    %420 = vmatprep.subr.bf16.mxu0 0
    %421 = vmatpush1.bf16.msra.mxu0 0
    %422 = vmatprep.subr.bf16.mxu0 0
    %423 = vmatpush1.bf16.msra.mxu0 0
    %424 = vmatprep.subr.bf16.mxu0 0
    %425 = vmatpush1.bf16.msra.mxu0 0
    %426 = vmatprep.subr.bf16.mxu0 0
    %427 = vmatpush1.bf16.msra.mxu0 0
    %428 = vmatprep.subr.bf16.mxu0 0
    %429 = vmatpush1.bf16.msra.mxu0 0
    %430 = vmatprep.subr.bf16.mxu0 0
    %431 = vmatpush1.bf16.msra.mxu0 0
    %432 = vmatprep.subr.bf16.mxu0 0
    %433 = vmatpush1.bf16.msra.mxu0 0
    %434 = vmatprep.subr.bf16.mxu0 0
    %435 = vmatpush1.bf16.msra.mxu0 0
    %436 = vmatprep.subr.bf16.mxu0 0
    %437 = vmatpush1.bf16.msra.mxu0 0
    %438 = vmatprep.subr.bf16.mxu0 0
    %439 = vmatpush1.bf16.msra.mxu0 0
    %440 = vmatprep.mubr.bf16.mxu0 0
    %441 = vmatmul.mubr.bf16.gmra.mrb[0].mxu0 %v292
    %v442 = vpop.f32.mrb[0].mxu0
    %v443 = vadd.f32 0.0, %v442
    %v444 = vpop.f32.mrb[0].mxu0
    %v445 = vpop.f32.mrb[0].mxu0
    %v446 = vadd.f32 0.0, %v445
    %v447 = vpop.f32.mrb[0].mxu0
    %448 = vdwg.mxu0
    %v449 = vmul.f32 %v386, %v257
    %v450 = vmul.f32 %v389, %v258
    %v451 = vmul.f32 %v386, %v259
    %v452 = vmul.f32 %v389, %v260
    %v453 = vmul.f32 %v386, %v261
    %v454 = vmul.f32 %v389, %v262
    %v455 = vmul.f32 %v386, %v263
    %v456 = vmul.f32 %v389, %v264
    %v457 = vpack.c.bf16 %v450, %v449
    %v458 = vpack.c.bf16 %v452, %v451
    %v459 = vpack.c.bf16 %v454, %v453
    %v460 = vpack.c.bf16 %v456, %v455
    %v461 = vpack.c.bf16 %v332, %v329
    %v463 = vsel %vm290, %v457, 0
    %v466 = vsel %vm290, %v458, 0
    %v469 = vsel %vm290, %v459, 0
    %v472 = vsel %vm290, %v460, 0
    %v475 = vsel %vm290, %v461, 0
    %477 = vmatprep.subr.bf16.mxu0 0
    %478 = vmatpush1.bf16.xpose.msra.mxu0 %v475
    %479 = vmatprep.subr.bf16.mxu0 0
    %480 = vmatpush1.bf16.xpose.msra.mxu0 0
    %481 = vmatprep.subr.bf16.mxu0 0
    %482 = vmatpush1.bf16.xpose.msra.mxu0 0
    %483 = vmatprep.subr.bf16.mxu0 0
    %484 = vmatpush1.bf16.xpose.msra.mxu0 0
    %485 = vmatprep.subr.bf16.mxu0 0
    %486 = vmatpush1.bf16.xpose.msra.mxu0 0
    %487 = vmatprep.subr.bf16.mxu0 0
    %488 = vmatpush1.bf16.xpose.msra.mxu0 0
    %489 = vmatprep.subr.bf16.mxu0 0
    %490 = vmatpush1.bf16.xpose.msra.mxu0 0
    %491 = vmatprep.subr.bf16.mxu0 0
    %492 = vmatpush1.bf16.xpose.msra.mxu0 0
    %493 = vmatprep.subr.bf16.mxu0 0
    %494 = vmatpush1.bf16.xpose.msra.mxu0 0
    %495 = vmatprep.subr.bf16.mxu0 0
    %496 = vmatpush1.bf16.xpose.msra.mxu0 0
    %497 = vmatprep.subr.bf16.mxu0 0
    %498 = vmatpush1.bf16.xpose.msra.mxu0 0
    %499 = vmatprep.subr.bf16.mxu0 0
    %500 = vmatpush1.bf16.xpose.msra.mxu0 0
    %501 = vmatprep.subr.bf16.mxu0 0
    %502 = vmatpush1.bf16.xpose.msra.mxu0 0
    %503 = vmatprep.subr.bf16.mxu0 0
    %504 = vmatpush1.bf16.xpose.msra.mxu0 0
    %505 = vmatprep.subr.bf16.mxu0 0
    %506 = vmatpush1.bf16.xpose.msra.mxu0 0
    %507 = vmatprep.subr.bf16.mxu0 0
    %508 = vmatpush1.bf16.xpose.msra.mxu0 0
    %509 = vmatprep.mubr.bf16.mxu0 0
    %510 = vmatmul.mubr.bf16.gmra.mrb[0].mxu0 %v463
    %v511 = vpop.f32.mrb[0].mxu0
    %v512 = vadd.f32 %v265, %v511
    %v513 = vpop.f32.mrb[0].mxu0
    %v514 = vpop.f32.mrb[0].mxu0
    %v515 = vadd.f32 %v266, %v514
    %v516 = vpop.f32.mrb[0].mxu0
    %517 = vmatprep.mubr.bf16.mxu0 0
    %518 = vmatmul.mubr.bf16.gmra.mrb[0].mxu0 %v466
    %v519 = vpop.f32.mrb[0].mxu0
    %v520 = vadd.f32 %v267, %v519
    %v521 = vpop.f32.mrb[0].mxu0
    %v522 = vpop.f32.mrb[0].mxu0
    %v523 = vadd.f32 %v268, %v522
    %v524 = vpop.f32.mrb[0].mxu0
    %525 = vmatprep.mubr.bf16.mxu0 0
    %526 = vmatmul.mubr.bf16.gmra.mrb[0].mxu0 %v469
    %v527 = vpop.f32.mrb[0].mxu0
    %v528 = vadd.f32 %v269, %v527
    %v529 = vpop.f32.mrb[0].mxu0
    %v530 = vpop.f32.mrb[0].mxu0
    %v531 = vadd.f32 %v270, %v530
    %v532 = vpop.f32.mrb[0].mxu0
    %533 = vmatprep.mubr.bf16.mxu0 0
    %534 = vmatmul.mubr.bf16.gmra.mrb[0].mxu0 %v472
    %v535 = vpop.f32.mrb[0].mxu0
    %v536 = vadd.f32 %v271, %v535
    %v537 = vpop.f32.mrb[0].mxu0
    %v538 = vpop.f32.mrb[0].mxu0
    %v539 = vadd.f32 %v272, %v538
    %v540 = vpop.f32.mrb[0].mxu0
    %541 = vdwg.mxu0
    %vm542 = vcmask 130048
    %v543 = vsel %vm542, %v512, -inf
    %544 = vmax.xlane.f32.xlu0 %v543
    %v545 = vpop.xlane.xlu0 %544
    %v546 = vsel %vm542, %v515, -inf
    %547 = vmax.xlane.f32.xlu0 %v546
    %v548 = vpop.xlane.xlu0 %547
    %v549 = vsel %vm542, %v520, -inf
    %550 = vmax.xlane.f32.xlu0 %v549
    %v551 = vpop.xlane.xlu0 %550
    %v552 = vsel %vm542, %v523, -inf
    %553 = vmax.xlane.f32.xlu0 %v552
    %v554 = vpop.xlane.xlu0 %553
    %v555 = vsel %vm542, %v528, -inf
    %556 = vmax.xlane.f32.xlu0 %v555
    %v557 = vpop.xlane.xlu0 %556
    %v558 = vsel %vm542, %v531, -inf
    %559 = vmax.xlane.f32.xlu0 %v558
    %v560 = vpop.xlane.xlu0 %559
    %v561 = vsel %vm542, %v536, -inf
    %562 = vmax.xlane.f32.xlu0 %v561
    %v563 = vpop.xlane.xlu0 %562
    %v564 = vsel %vm542, %v539, -inf
    %565 = vmax.xlane.f32.xlu0 %v564
    %v566 = vpop.xlane.xlu0 %565
    %v567 = vsub.f32 %v512, %v545
    %v568 = vsub.f32 %v515, %v548
    %v569 = vsub.f32 %v520, %v551
    %v570 = vsub.f32 %v523, %v554
    %v571 = vsub.f32 %v528, %v557
    %v572 = vsub.f32 %v531, %v560
    %v573 = vsub.f32 %v536, %v563
    %v574 = vsub.f32 %v539, %v566
    %v575 = vmul.f32 %v567, 1.442695
    %v576 = vpow.pop %v575
    %v577 = vmul.f32 %v568, 1.442695
    %v578 = vpow.pop %v577
    %v579 = vmul.f32 %v569, 1.442695
    %v580 = vpow.pop %v579
    %v581 = vmul.f32 %v570, 1.442695
    %v582 = vpow.pop %v581
    %v583 = vmul.f32 %v571, 1.442695
    %v584 = vpow.pop %v583
    %v585 = vmul.f32 %v572, 1.442695
    %v586 = vpow.pop %v585
    %v587 = vmul.f32 %v573, 1.442695
    %v588 = vpow.pop %v587
    %v589 = vmul.f32 %v574, 1.442695
    %v590 = vpow.pop %v589
    %v591 = vsel %vm542, %v576, 0.0
    %592 = vadd.xlane.f32.xlu0 %v591
    %v593 = vpop.xlane.xlu0 %592
    %v594 = vsel %vm542, %v578, 0.0
    %595 = vadd.xlane.f32.xlu0 %v594
    %v596 = vpop.xlane.xlu0 %595
    %v597 = vsel %vm542, %v580, 0.0
    %598 = vadd.xlane.f32.xlu0 %v597
    %v599 = vpop.xlane.xlu0 %598
    %v600 = vsel %vm542, %v582, 0.0
    %601 = vadd.xlane.f32.xlu0 %v600
    %v602 = vpop.xlane.xlu0 %601
    %v603 = vsel %vm542, %v584, 0.0
    %604 = vadd.xlane.f32.xlu0 %v603
    %v605 = vpop.xlane.xlu0 %604
    %v606 = vsel %vm542, %v586, 0.0
    %607 = vadd.xlane.f32.xlu0 %v606
    %v608 = vpop.xlane.xlu0 %607
    %v609 = vsel %vm542, %v588, 0.0
    %610 = vadd.xlane.f32.xlu0 %v609
    %v611 = vpop.xlane.xlu0 %610
    %v612 = vsel %vm542, %v590, 0.0
    %613 = vadd.xlane.f32.xlu0 %v612
    %v614 = vpop.xlane.xlu0 %613
    %v615 = vrcp.pop %v593
    %v616 = vrcp.pop %v596
    %v617 = vrcp.pop %v599
    %v618 = vrcp.pop %v602
    %v619 = vrcp.pop %v605
    %v620 = vrcp.pop %v608
    %v621 = vrcp.pop %v611
    %v622 = vrcp.pop %v614
    %v623 = vmul.f32 %v576, %v615
    %v624 = vmul.f32 %v578, %v616
    %v625 = vmul.f32 %v580, %v617
    %v626 = vmul.f32 %v582, %v618
    %v627 = vmul.f32 %v584, %v619
    %v628 = vmul.f32 %v586, %v620
    %v629 = vmul.f32 %v588, %v621
    %v630 = vmul.f32 %v590, %v622
    %v631 = vpack.c.bf16 %v624, %v623
    %v632 = vpack.c.bf16 %v626, %v625
    %v633 = vpack.c.bf16 %v628, %v627
    %v634 = vpack.c.bf16 %v630, %v629
    %v635 = vpack.c.bf16 %v446, %v443
    %v637 = vsel %vm542, %v631, 0
    %v640 = vsel %vm542, %v632, 0
    %v643 = vsel %vm542, %v633, 0
    %v646 = vsel %vm542, %v634, 0
    %648 = vmatprep.subr.bf16.mxu0 0
    %649 = vmatpush1.bf16.msra.mxu0 %v635
    %650 = vmatprep.subr.bf16.mxu0 0
    %651 = vmatpush1.bf16.msra.mxu0 0
    %652 = vmatprep.subr.bf16.mxu0 0
    %653 = vmatpush1.bf16.msra.mxu0 0
    %654 = vmatprep.subr.bf16.mxu0 0
    %655 = vmatpush1.bf16.msra.mxu0 0
    %656 = vmatprep.subr.bf16.mxu0 0
    %657 = vmatpush1.bf16.msra.mxu0 0
    %658 = vmatprep.subr.bf16.mxu0 0
    %659 = vmatpush1.bf16.msra.mxu0 0
    %660 = vmatprep.subr.bf16.mxu0 0
    %661 = vmatpush1.bf16.msra.mxu0 0
    %662 = vmatprep.subr.bf16.mxu0 0
    %663 = vmatpush1.bf16.msra.mxu0 0
    %664 = vmatprep.subr.bf16.mxu0 0
    %665 = vmatpush1.bf16.msra.mxu0 0
    %666 = vmatprep.subr.bf16.mxu0 0
    %667 = vmatpush1.bf16.msra.mxu0 0
    %668 = vmatprep.subr.bf16.mxu0 0
    %669 = vmatpush1.bf16.msra.mxu0 0
    %670 = vmatprep.subr.bf16.mxu0 0
    %671 = vmatpush1.bf16.msra.mxu0 0
    %672 = vmatprep.subr.bf16.mxu0 0
    %673 = vmatpush1.bf16.msra.mxu0 0
    %674 = vmatprep.subr.bf16.mxu0 0
    %675 = vmatpush1.bf16.msra.mxu0 0
    %676 = vmatprep.subr.bf16.mxu0 0
    %677 = vmatpush1.bf16.msra.mxu0 0
    %678 = vmatprep.subr.bf16.mxu0 0
    %679 = vmatpush1.bf16.msra.mxu0 0
    %680 = vmatprep.mubr.bf16.mxu0 0
    %681 = vmatmul.mubr.bf16.gmra.mrb[0].mxu0 %v637
    %v682 = vpop.f32.mrb[0].mxu0
    %v683 = vadd.f32 0.0, %v682
    %v684 = vpop.f32.mrb[0].mxu0
    %v685 = vpop.f32.mrb[0].mxu0
    %v686 = vadd.f32 0.0, %v685
    %v687 = vpop.f32.mrb[0].mxu0
    %688 = vmatprep.mubr.bf16.mxu0 0
    %689 = vmatmul.mubr.bf16.gmra.mrb[0].mxu0 %v640
    %v690 = vpop.f32.mrb[0].mxu0
    %v691 = vadd.f32 0.0, %v690
    %v692 = vpop.f32.mrb[0].mxu0
    %v693 = vpop.f32.mrb[0].mxu0
    %v694 = vadd.f32 0.0, %v693
    %v695 = vpop.f32.mrb[0].mxu0
    %696 = vmatprep.mubr.bf16.mxu0 0
    %697 = vmatmul.mubr.bf16.gmra.mrb[0].mxu0 %v643
    %v698 = vpop.f32.mrb[0].mxu0
    %v699 = vadd.f32 0.0, %v698
    %v700 = vpop.f32.mrb[0].mxu0
    %v701 = vpop.f32.mrb[0].mxu0
    %v702 = vadd.f32 0.0, %v701
    %v703 = vpop.f32.mrb[0].mxu0
    %704 = vmatprep.mubr.bf16.mxu0 0
    %705 = vmatmul.mubr.bf16.gmra.mrb[0].mxu0 %v646
    %v706 = vpop.f32.mrb[0].mxu0
    %v707 = vadd.f32 0.0, %v706
    %v708 = vpop.f32.mrb[0].mxu0
    %v709 = vpop.f32.mrb[0].mxu0
    %v710 = vadd.f32 0.0, %v709
    %v711 = vpop.f32.mrb[0].mxu0
    %712 = vdwg.mxu0
    %v713 = vmul.f32 %v683, %v257
    %v714 = vmul.f32 %v686, %v258
    %v715 = vmul.f32 %v691, %v259
    %v716 = vmul.f32 %v694, %v260
    %v717 = vmul.f32 %v699, %v261
    %v718 = vmul.f32 %v702, %v262
    %v719 = vmul.f32 %v707, %v263
    %v720 = vmul.f32 %v710, %v264
    %v721 = vsel %vm290, %v713, 0.0
    %v722 = vsel %vm290, %v715, 0.0
    %v723 = vadd.f32 %v721, %v722
    %v724 = vsel %vm290, %v717, 0.0
    %v725 = vadd.f32 %v723, %v724
    %v726 = vsel %vm290, %v719, 0.0
    %v727 = vadd.f32 %v725, %v726
    %v728 = vsel %vm290, %v714, 0.0
    %v729 = vsel %vm290, %v716, 0.0
    %v730 = vadd.f32 %v728, %v729
    %v731 = vsel %vm290, %v718, 0.0
    %v732 = vadd.f32 %v730, %v731
    %v733 = vsel %vm290, %v720, 0.0
    %v734 = vadd.f32 %v732, %v733
    %v735 = vpack.c.bf16 %v734, %v727
    %v736 = vld [vmem:[%s17] sm:$0xf]
    %v737 = vld [vmem:[%s17 + $0x4] sm:$0xf]
    %v738 = vld [vmem:[%s17 + $0x8] sm:$0xf]
    %v739 = vld [vmem:[%s17 + $0xc] sm:$0xf]
    %v740 = vld [vmem:[%s19] sm:$0x1]
    %v742 = vlaneseq
    %v743 = vshrl.u32 %v742, 7
    %v744 = vsub.s32 0, %v743
    %v745 = vrot.slane %v740, %v744
    %v751 = vunpack.c.l.b16 %v736
    %v752 = vunpack.c.l.b16 %v737
    %v753 = vunpack.c.l.b16 %v738
    %v754 = vunpack.c.l.b16 %v739
    %v755 = vpack.c.b16 %v752, %v751
    %v756 = vpack.c.b16 %v754, %v753
    %v760 = vsel %vm290, %v735, 0
    %762 = vmatprep.subr.bf16.mxu0 0
    %763 = vmatpush1.bf16.msra.mxu0 %v755
    %764 = vmatprep.subr.bf16.mxu0 0
    %765 = vmatpush1.bf16.msra.mxu0 %v756
    %766 = vmatprep.subr.bf16.mxu0 0
    %767 = vmatpush1.bf16.msra.mxu0 0
    %768 = vmatprep.subr.bf16.mxu0 0
    %769 = vmatpush1.bf16.msra.mxu0 0
    %770 = vmatprep.subr.bf16.mxu0 0
    %771 = vmatpush1.bf16.msra.mxu0 0
    %772 = vmatprep.subr.bf16.mxu0 0
    %773 = vmatpush1.bf16.msra.mxu0 0
    %774 = vmatprep.subr.bf16.mxu0 0
    %775 = vmatpush1.bf16.msra.mxu0 0
    %776 = vmatprep.subr.bf16.mxu0 0
    %777 = vmatpush1.bf16.msra.mxu0 0
    %778 = vmatprep.subr.bf16.mxu0 0
    %779 = vmatpush1.bf16.msra.mxu0 0
    %780 = vmatprep.subr.bf16.mxu0 0
    %781 = vmatpush1.bf16.msra.mxu0 0
    %782 = vmatprep.subr.bf16.mxu0 0
    %783 = vmatpush1.bf16.msra.mxu0 0
    %784 = vmatprep.subr.bf16.mxu0 0
    %785 = vmatpush1.bf16.msra.mxu0 0
    %786 = vmatprep.subr.bf16.mxu0 0
    %787 = vmatpush1.bf16.msra.mxu0 0
    %788 = vmatprep.subr.bf16.mxu0 0
    %789 = vmatpush1.bf16.msra.mxu0 0
    %790 = vmatprep.subr.bf16.mxu0 0
    %791 = vmatpush1.bf16.msra.mxu0 0
    %792 = vmatprep.subr.bf16.mxu0 0
    %793 = vmatpush1.bf16.msra.mxu0 0
    %794 = vmatprep.mubr.bf16.mxu0 0
    %795 = vmatmul.mubr.bf16.gmra.mrb[0].mxu0 %v760
    %v796 = vpop.f32.mrb[0].mxu0
    %v797 = vadd.f32 %v745, %v796
    %v798 = vpop.f32.mrb[0].mxu0
    %v799 = vpop.f32.mrb[0].mxu0
    %v800 = vadd.f32 %v745, %v799
    %v801 = vpop.f32.mrb[0].mxu0
    %802 = vdwg.mxu0
    %v803 = vadd.f32 %v797, %v249
    %v804 = vadd.f32 %v800, %v254
    %v805 = vld [vmem:[%s21] sm:$0x1]
    %v806 = vld [vmem:[%s23] sm:$0x1]
    %v807 = vsel %vm290, %v803, 0.0
    %808 = vadd.xlane.f32.xlu0 %v807
    %v809 = vpop.xlane.xlu0 %808
    %v810 = vsel %vm290, %v804, 0.0
    %811 = vadd.xlane.f32.xlu0 %v810
    %v812 = vpop.xlane.xlu0 %811
    %v813 = vrcp.pop 32.0
    %v814 = vmul.f32 %v809, %v813
    %v815 = vmul.f32 %v812, %v813
    %v816 = vsub.f32 %v803, %v814
    %v817 = vsub.f32 %v804, %v815
    %v818 = vmul.f32 %v816, %v816
    %v819 = vmul.f32 %v817, %v817
    %v820 = vsel %vm290, %v818, 0.0
    %821 = vadd.xlane.f32.xlu0 %v820
    %v822 = vpop.xlane.xlu0 %821
    %v823 = vsel %vm290, %v819, 0.0
    %824 = vadd.xlane.f32.xlu0 %v823
    %v825 = vpop.xlane.xlu0 %824
    %v826 = vmul.f32 %v822, %v813
    %v827 = vmul.f32 %v825, %v813
    %v828 = vadd.f32 %v826, 1e-05
    %v829 = vadd.f32 %v827, 1e-05
    %v830 = vrsqrt.pop %v828
    %v831 = vrsqrt.pop %v829
    %v832 = vmul.f32 %v816, %v830
    %v833 = vmul.f32 %v817, %v831
    %v835 = vlaneseq
    %v836 = vshrl.u32 %v835, 7
    %v837 = vsub.s32 0, %v836
    %v838 = vrot.slane %v805, %v837
    %v840 = vmul.f32 %v832, %v838
    %v841 = vmul.f32 %v833, %v838
    %v843 = vlaneseq
    %v844 = vshrl.u32 %v843, 7
    %v845 = vsub.s32 0, %v844
    %v846 = vrot.slane %v806, %v845
    %v848 = vadd.f32 %v840, %v846
    %v849 = vadd.f32 %v841, %v846
    %v850 = vpack.c.bf16 %v849, %v848
    %v851 = vld [vmem:[%s25] sm:$0xf]
    %v852 = vld [vmem:[%s25 + $0x4] sm:$0xf]
    %v853 = vld [vmem:[%s25 + $0x8] sm:$0xf]
    %v854 = vld [vmem:[%s25 + $0xc] sm:$0xf]
    %v855 = vld [vmem:[%s27] sm:$0x1]
    %v857 = vlaneseq
    %v858 = vshrl.u32 %v857, 7
    %v859 = vsub.s32 0, %v858
    %v860 = vrot.slane %v855, %v859
    %v866 = vunpack.c.l.b16 %v851
    %v867 = vunpack.c.l.b16 %v852
    %v868 = vunpack.c.l.b16 %v853
    %v869 = vunpack.c.l.b16 %v854
    %v870 = vpack.c.b16 %v867, %v866
    %v871 = vpack.c.b16 %v869, %v868
    %v875 = vsel %vm290, %v850, 0
    %877 = vmatprep.subr.bf16.mxu0 0
    %878 = vmatpush1.bf16.msra.mxu0 %v870
    %879 = vmatprep.subr.bf16.mxu0 0
    %880 = vmatpush1.bf16.msra.mxu0 %v871
    %881 = vmatprep.subr.bf16.mxu0 0
    %882 = vmatpush1.bf16.msra.mxu0 0
    %883 = vmatprep.subr.bf16.mxu0 0
    %884 = vmatpush1.bf16.msra.mxu0 0
    %885 = vmatprep.subr.bf16.mxu0 0
    %886 = vmatpush1.bf16.msra.mxu0 0
    %887 = vmatprep.subr.bf16.mxu0 0
    %888 = vmatpush1.bf16.msra.mxu0 0
    %889 = vmatprep.subr.bf16.mxu0 0
    %890 = vmatpush1.bf16.msra.mxu0 0
    %891 = vmatprep.subr.bf16.mxu0 0
    %892 = vmatpush1.bf16.msra.mxu0 0
    %893 = vmatprep.subr.bf16.mxu0 0
    %894 = vmatpush1.bf16.msra.mxu0 0
    %895 = vmatprep.subr.bf16.mxu0 0
    %896 = vmatpush1.bf16.msra.mxu0 0
    %897 = vmatprep.subr.bf16.mxu0 0
    %898 = vmatpush1.bf16.msra.mxu0 0
    %899 = vmatprep.subr.bf16.mxu0 0
    %900 = vmatpush1.bf16.msra.mxu0 0
    %901 = vmatprep.subr.bf16.mxu0 0
    %902 = vmatpush1.bf16.msra.mxu0 0
    %903 = vmatprep.subr.bf16.mxu0 0
    %904 = vmatpush1.bf16.msra.mxu0 0
    %905 = vmatprep.subr.bf16.mxu0 0
    %906 = vmatpush1.bf16.msra.mxu0 0
    %907 = vmatprep.subr.bf16.mxu0 0
    %908 = vmatpush1.bf16.msra.mxu0 0
    %909 = vmatprep.mubr.bf16.mxu0 0
    %910 = vmatmul.mubr.bf16.gmra.mrb[0].mxu0 %v875
    %v911 = vpop.f32.mrb[0].mxu0
    %v912 = vadd.f32 %v860, %v911
    %v913 = vpop.f32.mrb[0].mxu0
    %v914 = vpop.f32.mrb[0].mxu0
    %v915 = vadd.f32 %v860, %v914
    %v916 = vpop.f32.mrb[0].mxu0
    %917 = vdwg.mxu0
    %v918 = vmax.f32 %v912, 0.0
    %v919 = vmax.f32 %v915, 0.0
    %v920 = vpack.c.bf16 %v919, %v918
    %v921 = vld [vmem:[%s29] sm:$0xf]
    %v922 = vld [vmem:[%s29 + $0x4] sm:$0xf]
    %v923 = vld [vmem:[%s29 + $0x8] sm:$0xf]
    %v924 = vld [vmem:[%s29 + $0xc] sm:$0xf]
    %v925 = vld [vmem:[%s29 + $0x10] sm:$0xf]
    %v926 = vld [vmem:[%s29 + $0x14] sm:$0xf]
    %v927 = vld [vmem:[%s29 + $0x18] sm:$0xf]
    %v928 = vld [vmem:[%s29 + $0x1c] sm:$0xf]
    %v929 = vld [vmem:[%s29 + $0x20] sm:$0xf]
    %v930 = vld [vmem:[%s29 + $0x24] sm:$0xf]
    %v931 = vld [vmem:[%s29 + $0x28] sm:$0xf]
    %v932 = vld [vmem:[%s29 + $0x2c] sm:$0xf]
    %v933 = vld [vmem:[%s29 + $0x30] sm:$0xf]
    %v934 = vld [vmem:[%s29 + $0x34] sm:$0xf]
    %v935 = vld [vmem:[%s29 + $0x38] sm:$0xf]
    %v936 = vld [vmem:[%s29 + $0x3c] sm:$0xf]
    %v937 = vld [vmem:[%s31] sm:$0x1]
    %v939 = vlaneseq
    %v940 = vshrl.u32 %v939, 7
    %v941 = vsub.s32 0, %v940
    %v942 = vrot.slane %v937, %v941
    %v960 = vunpack.c.l.b16 %v921
    %v961 = vunpack.c.l.b16 %v922
    %v962 = vunpack.c.l.b16 %v923
    %v963 = vunpack.c.l.b16 %v924
    %v964 = vunpack.c.l.b16 %v925
    %v965 = vunpack.c.l.b16 %v926
    %v966 = vunpack.c.l.b16 %v927
    %v967 = vunpack.c.l.b16 %v928
    %v968 = vunpack.c.l.b16 %v929
    %v969 = vunpack.c.l.b16 %v930
    %v970 = vunpack.c.l.b16 %v931
    %v971 = vunpack.c.l.b16 %v932
    %v972 = vunpack.c.l.b16 %v933
    %v973 = vunpack.c.l.b16 %v934
    %v974 = vunpack.c.l.b16 %v935
    %v975 = vunpack.c.l.b16 %v936
    %v976 = vpack.c.b16 %v961, %v960
    %v977 = vpack.c.b16 %v963, %v962
    %v978 = vpack.c.b16 %v965, %v964
    %v979 = vpack.c.b16 %v967, %v966
    %v980 = vpack.c.b16 %v969, %v968
    %v981 = vpack.c.b16 %v971, %v970
    %v982 = vpack.c.b16 %v973, %v972
    %v983 = vpack.c.b16 %v975, %v974
    %992 = vmatprep.subr.bf16.mxu0 0
    %993 = vmatpush1.bf16.msra.mxu0 %v976
    %994 = vmatprep.subr.bf16.mxu0 0
    %995 = vmatpush1.bf16.msra.mxu0 %v977
    %996 = vmatprep.subr.bf16.mxu0 0
    %997 = vmatpush1.bf16.msra.mxu0 %v978
    %998 = vmatprep.subr.bf16.mxu0 0
    %999 = vmatpush1.bf16.msra.mxu0 %v979
    %1000 = vmatprep.subr.bf16.mxu0 0
    %1001 = vmatpush1.bf16.msra.mxu0 %v980
    %1002 = vmatprep.subr.bf16.mxu0 0
    %1003 = vmatpush1.bf16.msra.mxu0 %v981
    %1004 = vmatprep.subr.bf16.mxu0 0
    %1005 = vmatpush1.bf16.msra.mxu0 %v982
    %1006 = vmatprep.subr.bf16.mxu0 0
    %1007 = vmatpush1.bf16.msra.mxu0 %v983
    %1008 = vmatprep.subr.bf16.mxu0 0
    %1009 = vmatpush1.bf16.msra.mxu0 0
    %1010 = vmatprep.subr.bf16.mxu0 0
    %1011 = vmatpush1.bf16.msra.mxu0 0
    %1012 = vmatprep.subr.bf16.mxu0 0
    %1013 = vmatpush1.bf16.msra.mxu0 0
    %1014 = vmatprep.subr.bf16.mxu0 0
    %1015 = vmatpush1.bf16.msra.mxu0 0
    %1016 = vmatprep.subr.bf16.mxu0 0
    %1017 = vmatpush1.bf16.msra.mxu0 0
    %1018 = vmatprep.subr.bf16.mxu0 0
    %1019 = vmatpush1.bf16.msra.mxu0 0
    %1020 = vmatprep.subr.bf16.mxu0 0
    %1021 = vmatpush1.bf16.msra.mxu0 0
    %1022 = vmatprep.subr.bf16.mxu0 0
    %1023 = vmatpush1.bf16.msra.mxu0 0
    %1024 = vmatprep.mubr.bf16.mxu0 0
    %1025 = vmatmul.mubr.bf16.gmra.mrb[0].mxu0 %v920
    %v1026 = vpop.f32.mrb[0].mxu0
    %v1027 = vadd.f32 %v942, %v1026
    %v1028 = vpop.f32.mrb[0].mxu0
    %v1029 = vpop.f32.mrb[0].mxu0
    %v1030 = vadd.f32 %v942, %v1029
    %v1031 = vpop.f32.mrb[0].mxu0
    %1032 = vdwg.mxu0
    %v1033 = vadd.f32 %v1027, %v848
    %v1034 = vadd.f32 %v1030, %v849
    %v1035 = vld [vmem:[%s33] sm:$0x1]
    %v1036 = vld [vmem:[%s35] sm:$0x1]
    %v1037 = vsel %vm290, %v1033, 0.0
    %1038 = vadd.xlane.f32.xlu0 %v1037
    %v1039 = vpop.xlane.xlu0 %1038
    %v1040 = vsel %vm290, %v1034, 0.0
    %1041 = vadd.xlane.f32.xlu0 %v1040
    %v1042 = vpop.xlane.xlu0 %1041
    %v1043 = vmul.f32 %v1039, %v813
    %v1044 = vmul.f32 %v1042, %v813
    %v1045 = vsub.f32 %v1033, %v1043
    %v1046 = vsub.f32 %v1034, %v1044
    %v1047 = vmul.f32 %v1045, %v1045
    %v1048 = vmul.f32 %v1046, %v1046
    %v1049 = vsel %vm290, %v1047, 0.0
    %1050 = vadd.xlane.f32.xlu0 %v1049
    %v1051 = vpop.xlane.xlu0 %1050
    %v1052 = vsel %vm290, %v1048, 0.0
    %1053 = vadd.xlane.f32.xlu0 %v1052
    %v1054 = vpop.xlane.xlu0 %1053
    %v1055 = vmul.f32 %v1051, %v813
    %v1056 = vmul.f32 %v1054, %v813
    %v1057 = vadd.f32 %v1055, 1e-05
    %v1058 = vadd.f32 %v1056, 1e-05
    %v1059 = vrsqrt.pop %v1057
    %v1060 = vrsqrt.pop %v1058
    %v1061 = vmul.f32 %v1045, %v1059
    %v1062 = vmul.f32 %v1046, %v1060
    %v1064 = vlaneseq
    %v1065 = vshrl.u32 %v1064, 7
    %v1066 = vsub.s32 0, %v1065
    %v1067 = vrot.slane %v1035, %v1066
    %v1069 = vmul.f32 %v1061, %v1067
    %v1070 = vmul.f32 %v1062, %v1067
    %v1072 = vlaneseq
    %v1073 = vshrl.u32 %v1072, 7
    %v1074 = vsub.s32 0, %v1073
    %v1075 = vrot.slane %v1036, %v1074
    %v1077 = vadd.f32 %v1069, %v1075
    %v1078 = vadd.f32 %v1070, %v1075
    %v1079 = vpack.c.bf16 %v1078, %v1077
    %v1080 = vld [vmem:[%s37] sm:$0xf]
    %v1081 = vld [vmem:[%s37 + $0x4] sm:$0xf]
    %v1082 = vld [vmem:[%s37 + $0x8] sm:$0xf]
    %v1083 = vld [vmem:[%s37 + $0xc] sm:$0xf]
    %v1088 = vunpack.c.l.b16 %v1080
    %v1089 = vunpack.c.l.b16 %v1081
    %v1090 = vunpack.c.l.b16 %v1082
    %v1091 = vunpack.c.l.b16 %v1083
    %v1092 = vpack.c.b16 %v1089, %v1088
    %v1093 = vpack.c.b16 %v1091, %v1090
    %v1097 = vsel %vm290, %v1079, 0
    %1099 = vmatprep.subr.bf16.mxu0 0
    %1100 = vmatpush1.bf16.msra.mxu0 %v1092
    %1101 = vmatprep.subr.bf16.mxu0 0
    %1102 = vmatpush1.bf16.msra.mxu0 %v1093
    %1103 = vmatprep.subr.bf16.mxu0 0
    %1104 = vmatpush1.bf16.msra.mxu0 0
    %1105 = vmatprep.subr.bf16.mxu0 0
    %1106 = vmatpush1.bf16.msra.mxu0 0
    %1107 = vmatprep.subr.bf16.mxu0 0
    %1108 = vmatpush1.bf16.msra.mxu0 0
    %1109 = vmatprep.subr.bf16.mxu0 0
    %1110 = vmatpush1.bf16.msra.mxu0 0
    %1111 = vmatprep.subr.bf16.mxu0 0
    %1112 = vmatpush1.bf16.msra.mxu0 0
    %1113 = vmatprep.subr.bf16.mxu0 0
    %1114 = vmatpush1.bf16.msra.mxu0 0
    %1115 = vmatprep.subr.bf16.mxu0 0
    %1116 = vmatpush1.bf16.msra.mxu0 0
    %1117 = vmatprep.subr.bf16.mxu0 0
    %1118 = vmatpush1.bf16.msra.mxu0 0
    %1119 = vmatprep.subr.bf16.mxu0 0
    %1120 = vmatpush1.bf16.msra.mxu0 0
    %1121 = vmatprep.subr.bf16.mxu0 0
    %1122 = vmatpush1.bf16.msra.mxu0 0
    %1123 = vmatprep.subr.bf16.mxu0 0
    %1124 = vmatpush1.bf16.msra.mxu0 0
    %1125 = vmatprep.subr.bf16.mxu0 0
    %1126 = vmatpush1.bf16.msra.mxu0 0
    %1127 = vmatprep.subr.bf16.mxu0 0
    %1128 = vmatpush1.bf16.msra.mxu0 0
    %1129 = vmatprep.subr.bf16.mxu0 0
    %1130 = vmatpush1.bf16.msra.mxu0 0
    %1131 = vmatprep.mubr.bf16.mxu0 0
    %1132 = vmatmul.mubr.bf16.gmra.mrb[0].mxu0 %v1097
    %v1133 = vpop.f32.mrb[0].mxu0
    %v1134 = vadd.f32 0.0, %v1133
    %v1135 = vpop.f32.mrb[0].mxu0
    %v1136 = vpop.f32.mrb[0].mxu0
    %v1137 = vadd.f32 0.0, %v1136
    %v1138 = vpop.f32.mrb[0].mxu0
    %1139 = vdwg.mxu0
    %v1140 = vld [vmem:[%s39] sm:$0xf]
    %v1141 = vld [vmem:[%s39 + $0x4] sm:$0xf]
    %v1142 = vld [vmem:[%s39 + $0x8] sm:$0xf]
    %v1143 = vld [vmem:[%s39 + $0xc] sm:$0xf]
    %v1148 = vunpack.c.l.b16 %v1140
    %v1149 = vunpack.c.l.b16 %v1141
    %v1150 = vunpack.c.l.b16 %v1142
    %v1151 = vunpack.c.l.b16 %v1143
    %v1152 = vpack.c.b16 %v1149, %v1148
    %v1153 = vpack.c.b16 %v1151, %v1150
    %1156 = vmatprep.subr.bf16.mxu0 0
    %1157 = vmatpush1.bf16.msra.mxu0 %v1152
    %1158 = vmatprep.subr.bf16.mxu0 0
    %1159 = vmatpush1.bf16.msra.mxu0 %v1153
    %1160 = vmatprep.subr.bf16.mxu0 0
    %1161 = vmatpush1.bf16.msra.mxu0 0
    %1162 = vmatprep.subr.bf16.mxu0 0
    %1163 = vmatpush1.bf16.msra.mxu0 0
    %1164 = vmatprep.subr.bf16.mxu0 0
    %1165 = vmatpush1.bf16.msra.mxu0 0
    %1166 = vmatprep.subr.bf16.mxu0 0
    %1167 = vmatpush1.bf16.msra.mxu0 0
    %1168 = vmatprep.subr.bf16.mxu0 0
    %1169 = vmatpush1.bf16.msra.mxu0 0
    %1170 = vmatprep.subr.bf16.mxu0 0
    %1171 = vmatpush1.bf16.msra.mxu0 0
    %1172 = vmatprep.subr.bf16.mxu0 0
    %1173 = vmatpush1.bf16.msra.mxu0 0
    %1174 = vmatprep.subr.bf16.mxu0 0
    %1175 = vmatpush1.bf16.msra.mxu0 0
    %1176 = vmatprep.subr.bf16.mxu0 0
    %1177 = vmatpush1.bf16.msra.mxu0 0
    %1178 = vmatprep.subr.bf16.mxu0 0
    %1179 = vmatpush1.bf16.msra.mxu0 0
    %1180 = vmatprep.subr.bf16.mxu0 0
    %1181 = vmatpush1.bf16.msra.mxu0 0
    %1182 = vmatprep.subr.bf16.mxu0 0
    %1183 = vmatpush1.bf16.msra.mxu0 0
    %1184 = vmatprep.subr.bf16.mxu0 0
    %1185 = vmatpush1.bf16.msra.mxu0 0
    %1186 = vmatprep.subr.bf16.mxu0 0
    %1187 = vmatpush1.bf16.msra.mxu0 0
    %1188 = vmatprep.mubr.bf16.mxu0 0
    %1189 = vmatmul.mubr.bf16.gmra.mrb[0].mxu0 %v1097
    %v1190 = vpop.f32.mrb[0].mxu0
    %v1191 = vadd.f32 0.0, %v1190
    %v1192 = vpop.f32.mrb[0].mxu0
    %v1193 = vpop.f32.mrb[0].mxu0
    %v1194 = vadd.f32 0.0, %v1193
    %v1195 = vpop.f32.mrb[0].mxu0
    %1196 = vdwg.mxu0
    %v1197 = vld [vmem:[%s41] sm:$0xf]
    %v1198 = vld [vmem:[%s41 + $0x4] sm:$0xf]
    %v1199 = vld [vmem:[%s41 + $0x8] sm:$0xf]
    %v1200 = vld [vmem:[%s41 + $0xc] sm:$0xf]
    %v1205 = vunpack.c.l.b16 %v1197
    %v1206 = vunpack.c.l.b16 %v1198
    %v1207 = vunpack.c.l.b16 %v1199
    %v1208 = vunpack.c.l.b16 %v1200
    %v1209 = vpack.c.b16 %v1206, %v1205
    %v1210 = vpack.c.b16 %v1208, %v1207
    %1213 = vmatprep.subr.bf16.mxu0 0
    %1214 = vmatpush1.bf16.msra.mxu0 %v1209
    %1215 = vmatprep.subr.bf16.mxu0 0
    %1216 = vmatpush1.bf16.msra.mxu0 %v1210
    %1217 = vmatprep.subr.bf16.mxu0 0
    %1218 = vmatpush1.bf16.msra.mxu0 0
    %1219 = vmatprep.subr.bf16.mxu0 0
    %1220 = vmatpush1.bf16.msra.mxu0 0
    %1221 = vmatprep.subr.bf16.mxu0 0
    %1222 = vmatpush1.bf16.msra.mxu0 0
    %1223 = vmatprep.subr.bf16.mxu0 0
    %1224 = vmatpush1.bf16.msra.mxu0 0
    %1225 = vmatprep.subr.bf16.mxu0 0
    %1226 = vmatpush1.bf16.msra.mxu0 0
    %1227 = vmatprep.subr.bf16.mxu0 0
    %1228 = vmatpush1.bf16.msra.mxu0 0
    %1229 = vmatprep.subr.bf16.mxu0 0
    %1230 = vmatpush1.bf16.msra.mxu0 0
    %1231 = vmatprep.subr.bf16.mxu0 0
    %1232 = vmatpush1.bf16.msra.mxu0 0
    %1233 = vmatprep.subr.bf16.mxu0 0
    %1234 = vmatpush1.bf16.msra.mxu0 0
    %1235 = vmatprep.subr.bf16.mxu0 0
    %1236 = vmatpush1.bf16.msra.mxu0 0
    %1237 = vmatprep.subr.bf16.mxu0 0
    %1238 = vmatpush1.bf16.msra.mxu0 0
    %1239 = vmatprep.subr.bf16.mxu0 0
    %1240 = vmatpush1.bf16.msra.mxu0 0
    %1241 = vmatprep.subr.bf16.mxu0 0
    %1242 = vmatpush1.bf16.msra.mxu0 0
    %1243 = vmatprep.subr.bf16.mxu0 0
    %1244 = vmatpush1.bf16.msra.mxu0 0
    %1245 = vmatprep.mubr.bf16.mxu0 0
    %1246 = vmatmul.mubr.bf16.gmra.mrb[0].mxu0 %v1097
    %v1247 = vpop.f32.mrb[0].mxu0
    %v1248 = vadd.f32 0.0, %v1247
    %v1249 = vpop.f32.mrb[0].mxu0
    %v1250 = vpop.f32.mrb[0].mxu0
    %v1251 = vadd.f32 0.0, %v1250
    %v1252 = vpop.f32.mrb[0].mxu0
    %1253 = vdwg.mxu0
    %v1254 = vmul.f32 %v1191, %v257
    %v1255 = vmul.f32 %v1194, %v258
    %v1256 = vmul.f32 %v1191, %v259
    %v1257 = vmul.f32 %v1194, %v260
    %v1258 = vmul.f32 %v1191, %v261
    %v1259 = vmul.f32 %v1194, %v262
    %v1260 = vmul.f32 %v1191, %v263
    %v1261 = vmul.f32 %v1194, %v264
    %v1262 = vpack.c.bf16 %v1255, %v1254
    %v1263 = vpack.c.bf16 %v1257, %v1256
    %v1264 = vpack.c.bf16 %v1259, %v1258
    %v1265 = vpack.c.bf16 %v1261, %v1260
    %v1266 = vpack.c.bf16 %v1137, %v1134
    %v1268 = vsel %vm290, %v1262, 0
    %v1271 = vsel %vm290, %v1263, 0
    %v1274 = vsel %vm290, %v1264, 0
    %v1277 = vsel %vm290, %v1265, 0
    %v1280 = vsel %vm290, %v1266, 0
    %1282 = vmatprep.subr.bf16.mxu0 0
    %1283 = vmatpush1.bf16.xpose.msra.mxu0 %v1280
    %1284 = vmatprep.subr.bf16.mxu0 0
    %1285 = vmatpush1.bf16.xpose.msra.mxu0 0
    %1286 = vmatprep.subr.bf16.mxu0 0
    %1287 = vmatpush1.bf16.xpose.msra.mxu0 0
    %1288 = vmatprep.subr.bf16.mxu0 0
    %1289 = vmatpush1.bf16.xpose.msra.mxu0 0
    %1290 = vmatprep.subr.bf16.mxu0 0
    %1291 = vmatpush1.bf16.xpose.msra.mxu0 0
    %1292 = vmatprep.subr.bf16.mxu0 0
    %1293 = vmatpush1.bf16.xpose.msra.mxu0 0
    %1294 = vmatprep.subr.bf16.mxu0 0
    %1295 = vmatpush1.bf16.xpose.msra.mxu0 0
    %1296 = vmatprep.subr.bf16.mxu0 0
    %1297 = vmatpush1.bf16.xpose.msra.mxu0 0
    %1298 = vmatprep.subr.bf16.mxu0 0
    %1299 = vmatpush1.bf16.xpose.msra.mxu0 0
    %1300 = vmatprep.subr.bf16.mxu0 0
    %1301 = vmatpush1.bf16.xpose.msra.mxu0 0
    %1302 = vmatprep.subr.bf16.mxu0 0
    %1303 = vmatpush1.bf16.xpose.msra.mxu0 0
    %1304 = vmatprep.subr.bf16.mxu0 0
    %1305 = vmatpush1.bf16.xpose.msra.mxu0 0
    %1306 = vmatprep.subr.bf16.mxu0 0
    %1307 = vmatpush1.bf16.xpose.msra.mxu0 0
    %1308 = vmatprep.subr.bf16.mxu0 0
    %1309 = vmatpush1.bf16.xpose.msra.mxu0 0
    %1310 = vmatprep.subr.bf16.mxu0 0
    %1311 = vmatpush1.bf16.xpose.msra.mxu0 0
    %1312 = vmatprep.subr.bf16.mxu0 0
    %1313 = vmatpush1.bf16.xpose.msra.mxu0 0
    %1314 = vmatprep.mubr.bf16.mxu0 0
    %1315 = vmatmul.mubr.bf16.gmra.mrb[0].mxu0 %v1268
    %v1316 = vpop.f32.mrb[0].mxu0
    %v1317 = vadd.f32 %v265, %v1316
    %v1318 = vpop.f32.mrb[0].mxu0
    %v1319 = vpop.f32.mrb[0].mxu0
    %v1320 = vadd.f32 %v266, %v1319
    %v1321 = vpop.f32.mrb[0].mxu0
    %1322 = vmatprep.mubr.bf16.mxu0 0
    %1323 = vmatmul.mubr.bf16.gmra.mrb[0].mxu0 %v1271
    %v1324 = vpop.f32.mrb[0].mxu0
    %v1325 = vadd.f32 %v267, %v1324
    %v1326 = vpop.f32.mrb[0].mxu0
    %v1327 = vpop.f32.mrb[0].mxu0
    %v1328 = vadd.f32 %v268, %v1327
    %v1329 = vpop.f32.mrb[0].mxu0
    %1330 = vmatprep.mubr.bf16.mxu0 0
    %1331 = vmatmul.mubr.bf16.gmra.mrb[0].mxu0 %v1274
    %v1332 = vpop.f32.mrb[0].mxu0
    %v1333 = vadd.f32 %v269, %v1332
    %v1334 = vpop.f32.mrb[0].mxu0
    %v1335 = vpop.f32.mrb[0].mxu0
    %v1336 = vadd.f32 %v270, %v1335
    %v1337 = vpop.f32.mrb[0].mxu0
    %1338 = vmatprep.mubr.bf16.mxu0 0
    %1339 = vmatmul.mubr.bf16.gmra.mrb[0].mxu0 %v1277
    %v1340 = vpop.f32.mrb[0].mxu0
    %v1341 = vadd.f32 %v271, %v1340
    %v1342 = vpop.f32.mrb[0].mxu0
    %v1343 = vpop.f32.mrb[0].mxu0
    %v1344 = vadd.f32 %v272, %v1343
    %v1345 = vpop.f32.mrb[0].mxu0
    %1346 = vdwg.mxu0
    %v1347 = vsel %vm542, %v1317, -inf
    %1348 = vmax.xlane.f32.xlu0 %v1347
    %v1349 = vpop.xlane.xlu0 %1348
    %v1350 = vsel %vm542, %v1320, -inf
    %1351 = vmax.xlane.f32.xlu0 %v1350
    %v1352 = vpop.xlane.xlu0 %1351
    %v1353 = vsel %vm542, %v1325, -inf
    %1354 = vmax.xlane.f32.xlu0 %v1353
    %v1355 = vpop.xlane.xlu0 %1354
    %v1356 = vsel %vm542, %v1328, -inf
    %1357 = vmax.xlane.f32.xlu0 %v1356
    %v1358 = vpop.xlane.xlu0 %1357
    %v1359 = vsel %vm542, %v1333, -inf
    %1360 = vmax.xlane.f32.xlu0 %v1359
    %v1361 = vpop.xlane.xlu0 %1360
    %v1362 = vsel %vm542, %v1336, -inf
    %1363 = vmax.xlane.f32.xlu0 %v1362
    %v1364 = vpop.xlane.xlu0 %1363
    %v1365 = vsel %vm542, %v1341, -inf
    %1366 = vmax.xlane.f32.xlu0 %v1365
    %v1367 = vpop.xlane.xlu0 %1366
    %v1368 = vsel %vm542, %v1344, -inf
    %1369 = vmax.xlane.f32.xlu0 %v1368
    %v1370 = vpop.xlane.xlu0 %1369
    %v1371 = vsub.f32 %v1317, %v1349
    %v1372 = vsub.f32 %v1320, %v1352
    %v1373 = vsub.f32 %v1325, %v1355
    %v1374 = vsub.f32 %v1328, %v1358
    %v1375 = vsub.f32 %v1333, %v1361
    %v1376 = vsub.f32 %v1336, %v1364
    %v1377 = vsub.f32 %v1341, %v1367
    %v1378 = vsub.f32 %v1344, %v1370
    %v1379 = vmul.f32 %v1371, 1.442695
    %v1380 = vpow.pop %v1379
    %v1381 = vmul.f32 %v1372, 1.442695
    %v1382 = vpow.pop %v1381
    %v1383 = vmul.f32 %v1373, 1.442695
    %v1384 = vpow.pop %v1383
    %v1385 = vmul.f32 %v1374, 1.442695
    %v1386 = vpow.pop %v1385
    %v1387 = vmul.f32 %v1375, 1.442695
    %v1388 = vpow.pop %v1387
    %v1389 = vmul.f32 %v1376, 1.442695
    %v1390 = vpow.pop %v1389
    %v1391 = vmul.f32 %v1377, 1.442695
    %v1392 = vpow.pop %v1391
    %v1393 = vmul.f32 %v1378, 1.442695
    %v1394 = vpow.pop %v1393
    %v1395 = vsel %vm542, %v1380, 0.0
    %1396 = vadd.xlane.f32.xlu0 %v1395
    %v1397 = vpop.xlane.xlu0 %1396
    %v1398 = vsel %vm542, %v1382, 0.0
    %1399 = vadd.xlane.f32.xlu0 %v1398
    %v1400 = vpop.xlane.xlu0 %1399
    %v1401 = vsel %vm542, %v1384, 0.0
    %1402 = vadd.xlane.f32.xlu0 %v1401
    %v1403 = vpop.xlane.xlu0 %1402
    %v1404 = vsel %vm542, %v1386, 0.0
    %1405 = vadd.xlane.f32.xlu0 %v1404
    %v1406 = vpop.xlane.xlu0 %1405
    %v1407 = vsel %vm542, %v1388, 0.0
    %1408 = vadd.xlane.f32.xlu0 %v1407
    %v1409 = vpop.xlane.xlu0 %1408
    %v1410 = vsel %vm542, %v1390, 0.0
    %1411 = vadd.xlane.f32.xlu0 %v1410
    %v1412 = vpop.xlane.xlu0 %1411
    %v1413 = vsel %vm542, %v1392, 0.0
    %1414 = vadd.xlane.f32.xlu0 %v1413
    %v1415 = vpop.xlane.xlu0 %1414
    %v1416 = vsel %vm542, %v1394, 0.0
    %1417 = vadd.xlane.f32.xlu0 %v1416
    %v1418 = vpop.xlane.xlu0 %1417
    %v1419 = vrcp.pop %v1397
    %v1420 = vrcp.pop %v1400
    %v1421 = vrcp.pop %v1403
    %v1422 = vrcp.pop %v1406
    %v1423 = vrcp.pop %v1409
    %v1424 = vrcp.pop %v1412
    %v1425 = vrcp.pop %v1415
    %v1426 = vrcp.pop %v1418
    %v1427 = vmul.f32 %v1380, %v1419
    %v1428 = vmul.f32 %v1382, %v1420
    %v1429 = vmul.f32 %v1384, %v1421
    %v1430 = vmul.f32 %v1386, %v1422
    %v1431 = vmul.f32 %v1388, %v1423
    %v1432 = vmul.f32 %v1390, %v1424
    %v1433 = vmul.f32 %v1392, %v1425
    %v1434 = vmul.f32 %v1394, %v1426
    %v1435 = vpack.c.bf16 %v1428, %v1427
    %v1436 = vpack.c.bf16 %v1430, %v1429
    %v1437 = vpack.c.bf16 %v1432, %v1431
    %v1438 = vpack.c.bf16 %v1434, %v1433
    %v1439 = vpack.c.bf16 %v1251, %v1248
    %v1441 = vsel %vm542, %v1435, 0
    %v1444 = vsel %vm542, %v1436, 0
    %v1447 = vsel %vm542, %v1437, 0
    %v1450 = vsel %vm542, %v1438, 0
    %1452 = vmatprep.subr.bf16.mxu0 0
    %1453 = vmatpush1.bf16.msra.mxu0 %v1439
    %1454 = vmatprep.subr.bf16.mxu0 0
    %1455 = vmatpush1.bf16.msra.mxu0 0
    %1456 = vmatprep.subr.bf16.mxu0 0
    %1457 = vmatpush1.bf16.msra.mxu0 0
    %1458 = vmatprep.subr.bf16.mxu0 0
    %1459 = vmatpush1.bf16.msra.mxu0 0
    %1460 = vmatprep.subr.bf16.mxu0 0
    %1461 = vmatpush1.bf16.msra.mxu0 0
    %1462 = vmatprep.subr.bf16.mxu0 0
    %1463 = vmatpush1.bf16.msra.mxu0 0
    %1464 = vmatprep.subr.bf16.mxu0 0
    %1465 = vmatpush1.bf16.msra.mxu0 0
    %1466 = vmatprep.subr.bf16.mxu0 0
    %1467 = vmatpush1.bf16.msra.mxu0 0
    %1468 = vmatprep.subr.bf16.mxu0 0
    %1469 = vmatpush1.bf16.msra.mxu0 0
    %1470 = vmatprep.subr.bf16.mxu0 0
    %1471 = vmatpush1.bf16.msra.mxu0 0
    %1472 = vmatprep.subr.bf16.mxu0 0
    %1473 = vmatpush1.bf16.msra.mxu0 0
    %1474 = vmatprep.subr.bf16.mxu0 0
    %1475 = vmatpush1.bf16.msra.mxu0 0
    %1476 = vmatprep.subr.bf16.mxu0 0
    %1477 = vmatpush1.bf16.msra.mxu0 0
    %1478 = vmatprep.subr.bf16.mxu0 0
    %1479 = vmatpush1.bf16.msra.mxu0 0
    %1480 = vmatprep.subr.bf16.mxu0 0
    %1481 = vmatpush1.bf16.msra.mxu0 0
    %1482 = vmatprep.subr.bf16.mxu0 0
    %1483 = vmatpush1.bf16.msra.mxu0 0
    %1484 = vmatprep.mubr.bf16.mxu0 0
    %1485 = vmatmul.mubr.bf16.gmra.mrb[0].mxu0 %v1441
    %v1486 = vpop.f32.mrb[0].mxu0
    %v1487 = vadd.f32 0.0, %v1486
    %v1488 = vpop.f32.mrb[0].mxu0
    %v1489 = vpop.f32.mrb[0].mxu0
    %v1490 = vadd.f32 0.0, %v1489
    %v1491 = vpop.f32.mrb[0].mxu0
    %1492 = vmatprep.mubr.bf16.mxu0 0
    %1493 = vmatmul.mubr.bf16.gmra.mrb[0].mxu0 %v1444
    %v1494 = vpop.f32.mrb[0].mxu0
    %v1495 = vadd.f32 0.0, %v1494
    %v1496 = vpop.f32.mrb[0].mxu0
    %v1497 = vpop.f32.mrb[0].mxu0
    %v1498 = vadd.f32 0.0, %v1497
    %v1499 = vpop.f32.mrb[0].mxu0
    %1500 = vmatprep.mubr.bf16.mxu0 0
    %1501 = vmatmul.mubr.bf16.gmra.mrb[0].mxu0 %v1447
    %v1502 = vpop.f32.mrb[0].mxu0
    %v1503 = vadd.f32 0.0, %v1502
    %v1504 = vpop.f32.mrb[0].mxu0
    %v1505 = vpop.f32.mrb[0].mxu0
    %v1506 = vadd.f32 0.0, %v1505
    %v1507 = vpop.f32.mrb[0].mxu0
    %1508 = vmatprep.mubr.bf16.mxu0 0
    %1509 = vmatmul.mubr.bf16.gmra.mrb[0].mxu0 %v1450
    %v1510 = vpop.f32.mrb[0].mxu0
    %v1511 = vadd.f32 0.0, %v1510
    %v1512 = vpop.f32.mrb[0].mxu0
    %v1513 = vpop.f32.mrb[0].mxu0
    %v1514 = vadd.f32 0.0, %v1513
    %v1515 = vpop.f32.mrb[0].mxu0
    %1516 = vdwg.mxu0
    %v1517 = vmul.f32 %v1487, %v257
    %v1518 = vmul.f32 %v1490, %v258
    %v1519 = vmul.f32 %v1495, %v259
    %v1520 = vmul.f32 %v1498, %v260
    %v1521 = vmul.f32 %v1503, %v261
    %v1522 = vmul.f32 %v1506, %v262
    %v1523 = vmul.f32 %v1511, %v263
    %v1524 = vmul.f32 %v1514, %v264
    %v1525 = vsel %vm290, %v1517, 0.0
    %v1526 = vsel %vm290, %v1519, 0.0
    %v1527 = vadd.f32 %v1525, %v1526
    %v1528 = vsel %vm290, %v1521, 0.0
    %v1529 = vadd.f32 %v1527, %v1528
    %v1530 = vsel %vm290, %v1523, 0.0
    %v1531 = vadd.f32 %v1529, %v1530
    %v1532 = vsel %vm290, %v1518, 0.0
    %v1533 = vsel %vm290, %v1520, 0.0
    %v1534 = vadd.f32 %v1532, %v1533
    %v1535 = vsel %vm290, %v1522, 0.0
    %v1536 = vadd.f32 %v1534, %v1535
    %v1537 = vsel %vm290, %v1524, 0.0
    %v1538 = vadd.f32 %v1536, %v1537
    %v1539 = vpack.c.bf16 %v1538, %v1531
    %v1540 = vld [vmem:[%s43] sm:$0xf]
    %v1541 = vld [vmem:[%s43 + $0x4] sm:$0xf]
    %v1542 = vld [vmem:[%s43 + $0x8] sm:$0xf]
    %v1543 = vld [vmem:[%s43 + $0xc] sm:$0xf]
    %v1544 = vld [vmem:[%s45] sm:$0x1]
    %v1546 = vlaneseq
    %v1547 = vshrl.u32 %v1546, 7
    %v1548 = vsub.s32 0, %v1547
    %v1549 = vrot.slane %v1544, %v1548
    %v1555 = vunpack.c.l.b16 %v1540
    %v1556 = vunpack.c.l.b16 %v1541
    %v1557 = vunpack.c.l.b16 %v1542
    %v1558 = vunpack.c.l.b16 %v1543
    %v1559 = vpack.c.b16 %v1556, %v1555
    %v1560 = vpack.c.b16 %v1558, %v1557
    %v1564 = vsel %vm290, %v1539, 0
    %1566 = vmatprep.subr.bf16.mxu0 0
    %1567 = vmatpush1.bf16.msra.mxu0 %v1559
    %1568 = vmatprep.subr.bf16.mxu0 0
    %1569 = vmatpush1.bf16.msra.mxu0 %v1560
    %1570 = vmatprep.subr.bf16.mxu0 0
    %1571 = vmatpush1.bf16.msra.mxu0 0
    %1572 = vmatprep.subr.bf16.mxu0 0
    %1573 = vmatpush1.bf16.msra.mxu0 0
    %1574 = vmatprep.subr.bf16.mxu0 0
    %1575 = vmatpush1.bf16.msra.mxu0 0
    %1576 = vmatprep.subr.bf16.mxu0 0
    %1577 = vmatpush1.bf16.msra.mxu0 0
    %1578 = vmatprep.subr.bf16.mxu0 0
    %1579 = vmatpush1.bf16.msra.mxu0 0
    %1580 = vmatprep.subr.bf16.mxu0 0
    %1581 = vmatpush1.bf16.msra.mxu0 0
    %1582 = vmatprep.subr.bf16.mxu0 0
    %1583 = vmatpush1.bf16.msra.mxu0 0
    %1584 = vmatprep.subr.bf16.mxu0 0
    %1585 = vmatpush1.bf16.msra.mxu0 0
    %1586 = vmatprep.subr.bf16.mxu0 0
    %1587 = vmatpush1.bf16.msra.mxu0 0
    %1588 = vmatprep.subr.bf16.mxu0 0
    %1589 = vmatpush1.bf16.msra.mxu0 0
    %1590 = vmatprep.subr.bf16.mxu0 0
    %1591 = vmatpush1.bf16.msra.mxu0 0
    %1592 = vmatprep.subr.bf16.mxu0 0
    %1593 = vmatpush1.bf16.msra.mxu0 0
    %1594 = vmatprep.subr.bf16.mxu0 0
    %1595 = vmatpush1.bf16.msra.mxu0 0
    %1596 = vmatprep.subr.bf16.mxu0 0
    %1597 = vmatpush1.bf16.msra.mxu0 0
    %1598 = vmatprep.mubr.bf16.mxu0 0
    %1599 = vmatmul.mubr.bf16.gmra.mrb[0].mxu0 %v1564
    %v1600 = vpop.f32.mrb[0].mxu0
    %v1601 = vadd.f32 %v1549, %v1600
    %v1602 = vpop.f32.mrb[0].mxu0
    %v1603 = vpop.f32.mrb[0].mxu0
    %v1604 = vadd.f32 %v1549, %v1603
    %v1605 = vpop.f32.mrb[0].mxu0
    %1606 = vdwg.mxu0
    %v1607 = vadd.f32 %v1601, %v1077
    %v1608 = vadd.f32 %v1604, %v1078
    %v1609 = vld [vmem:[%s47] sm:$0x1]
    %v1610 = vld [vmem:[%s49] sm:$0x1]
    %v1611 = vsel %vm290, %v1607, 0.0
    %1612 = vadd.xlane.f32.xlu0 %v1611
    %v1613 = vpop.xlane.xlu0 %1612
    %v1614 = vsel %vm290, %v1608, 0.0
    %1615 = vadd.xlane.f32.xlu0 %v1614
    %v1616 = vpop.xlane.xlu0 %1615
    %v1617 = vmul.f32 %v1613, %v813
    %v1618 = vmul.f32 %v1616, %v813
    %v1619 = vsub.f32 %v1607, %v1617
    %v1620 = vsub.f32 %v1608, %v1618
    %v1621 = vmul.f32 %v1619, %v1619
    %v1622 = vmul.f32 %v1620, %v1620
    %v1623 = vsel %vm290, %v1621, 0.0
    %1624 = vadd.xlane.f32.xlu0 %v1623
    %v1625 = vpop.xlane.xlu0 %1624
    %v1626 = vsel %vm290, %v1622, 0.0
    %1627 = vadd.xlane.f32.xlu0 %v1626
    %v1628 = vpop.xlane.xlu0 %1627
    %v1629 = vmul.f32 %v1625, %v813
    %v1630 = vmul.f32 %v1628, %v813
    %v1631 = vadd.f32 %v1629, 1e-05
    %v1632 = vadd.f32 %v1630, 1e-05
    %v1633 = vrsqrt.pop %v1631
    %v1634 = vrsqrt.pop %v1632
    %v1635 = vmul.f32 %v1619, %v1633
    %v1636 = vmul.f32 %v1620, %v1634
    %v1638 = vlaneseq
    %v1639 = vshrl.u32 %v1638, 7
    %v1640 = vsub.s32 0, %v1639
    %v1641 = vrot.slane %v1609, %v1640
    %v1643 = vmul.f32 %v1635, %v1641
    %v1644 = vmul.f32 %v1636, %v1641
    %v1646 = vlaneseq
    %v1647 = vshrl.u32 %v1646, 7
    %v1648 = vsub.s32 0, %v1647
    %v1649 = vrot.slane %v1610, %v1648
    %v1651 = vadd.f32 %v1643, %v1649
    %v1652 = vadd.f32 %v1644, %v1649
    %v1653 = vpack.c.bf16 %v1652, %v1651
    %v1654 = vld [vmem:[%s51] sm:$0xf]
    %v1655 = vld [vmem:[%s51 + $0x4] sm:$0xf]
    %v1656 = vld [vmem:[%s51 + $0x8] sm:$0xf]
    %v1657 = vld [vmem:[%s51 + $0xc] sm:$0xf]
    %v1658 = vld [vmem:[%s53] sm:$0x1]
    %v1660 = vlaneseq
    %v1661 = vshrl.u32 %v1660, 7
    %v1662 = vsub.s32 0, %v1661
    %v1663 = vrot.slane %v1658, %v1662
    %v1669 = vunpack.c.l.b16 %v1654
    %v1670 = vunpack.c.l.b16 %v1655
    %v1671 = vunpack.c.l.b16 %v1656
    %v1672 = vunpack.c.l.b16 %v1657
    %v1673 = vpack.c.b16 %v1670, %v1669
    %v1674 = vpack.c.b16 %v1672, %v1671
    %v1678 = vsel %vm290, %v1653, 0
    %1680 = vmatprep.subr.bf16.mxu0 0
    %1681 = vmatpush1.bf16.msra.mxu0 %v1673
    %1682 = vmatprep.subr.bf16.mxu0 0
    %1683 = vmatpush1.bf16.msra.mxu0 %v1674
    %1684 = vmatprep.subr.bf16.mxu0 0
    %1685 = vmatpush1.bf16.msra.mxu0 0
    %1686 = vmatprep.subr.bf16.mxu0 0
    %1687 = vmatpush1.bf16.msra.mxu0 0
    %1688 = vmatprep.subr.bf16.mxu0 0
    %1689 = vmatpush1.bf16.msra.mxu0 0
    %1690 = vmatprep.subr.bf16.mxu0 0
    %1691 = vmatpush1.bf16.msra.mxu0 0
    %1692 = vmatprep.subr.bf16.mxu0 0
    %1693 = vmatpush1.bf16.msra.mxu0 0
    %1694 = vmatprep.subr.bf16.mxu0 0
    %1695 = vmatpush1.bf16.msra.mxu0 0
    %1696 = vmatprep.subr.bf16.mxu0 0
    %1697 = vmatpush1.bf16.msra.mxu0 0
    %1698 = vmatprep.subr.bf16.mxu0 0
    %1699 = vmatpush1.bf16.msra.mxu0 0
    %1700 = vmatprep.subr.bf16.mxu0 0
    %1701 = vmatpush1.bf16.msra.mxu0 0
    %1702 = vmatprep.subr.bf16.mxu0 0
    %1703 = vmatpush1.bf16.msra.mxu0 0
    %1704 = vmatprep.subr.bf16.mxu0 0
    %1705 = vmatpush1.bf16.msra.mxu0 0
    %1706 = vmatprep.subr.bf16.mxu0 0
    %1707 = vmatpush1.bf16.msra.mxu0 0
    %1708 = vmatprep.subr.bf16.mxu0 0
    %1709 = vmatpush1.bf16.msra.mxu0 0
    %1710 = vmatprep.subr.bf16.mxu0 0
    %1711 = vmatpush1.bf16.msra.mxu0 0
    %1712 = vmatprep.mubr.bf16.mxu0 0
    %1713 = vmatmul.mubr.bf16.gmra.mrb[0].mxu0 %v1678
    %v1714 = vpop.f32.mrb[0].mxu0
    %v1715 = vadd.f32 %v1663, %v1714
    %v1716 = vpop.f32.mrb[0].mxu0
    %v1717 = vpop.f32.mrb[0].mxu0
    %v1718 = vadd.f32 %v1663, %v1717
    %v1719 = vpop.f32.mrb[0].mxu0
    %1720 = vdwg.mxu0
    %v1721 = vmax.f32 %v1715, 0.0
    %v1722 = vmax.f32 %v1718, 0.0
    %v1723 = vpack.c.bf16 %v1722, %v1721
    %v1724 = vld [vmem:[%s55] sm:$0xf]
    %v1725 = vld [vmem:[%s55 + $0x4] sm:$0xf]
    %v1726 = vld [vmem:[%s55 + $0x8] sm:$0xf]
    %v1727 = vld [vmem:[%s55 + $0xc] sm:$0xf]
    %v1728 = vld [vmem:[%s55 + $0x10] sm:$0xf]
    %v1729 = vld [vmem:[%s55 + $0x14] sm:$0xf]
    %v1730 = vld [vmem:[%s55 + $0x18] sm:$0xf]
    %v1731 = vld [vmem:[%s55 + $0x1c] sm:$0xf]
    %v1732 = vld [vmem:[%s55 + $0x20] sm:$0xf]
    %v1733 = vld [vmem:[%s55 + $0x24] sm:$0xf]
    %v1734 = vld [vmem:[%s55 + $0x28] sm:$0xf]
    %v1735 = vld [vmem:[%s55 + $0x2c] sm:$0xf]
    %v1736 = vld [vmem:[%s55 + $0x30] sm:$0xf]
    %v1737 = vld [vmem:[%s55 + $0x34] sm:$0xf]
    %v1738 = vld [vmem:[%s55 + $0x38] sm:$0xf]
    %v1739 = vld [vmem:[%s55 + $0x3c] sm:$0xf]
    %v1740 = vld [vmem:[%s57] sm:$0x1]
    %v1742 = vlaneseq
    %v1743 = vshrl.u32 %v1742, 7
    %v1744 = vsub.s32 0, %v1743
    %v1745 = vrot.slane %v1740, %v1744
    %v1763 = vunpack.c.l.b16 %v1724
    %v1764 = vunpack.c.l.b16 %v1725
    %v1765 = vunpack.c.l.b16 %v1726
    %v1766 = vunpack.c.l.b16 %v1727
    %v1767 = vunpack.c.l.b16 %v1728
    %v1768 = vunpack.c.l.b16 %v1729
    %v1769 = vunpack.c.l.b16 %v1730
    %v1770 = vunpack.c.l.b16 %v1731
    %v1771 = vunpack.c.l.b16 %v1732
    %v1772 = vunpack.c.l.b16 %v1733
    %v1773 = vunpack.c.l.b16 %v1734
    %v1774 = vunpack.c.l.b16 %v1735
    %v1775 = vunpack.c.l.b16 %v1736
    %v1776 = vunpack.c.l.b16 %v1737
    %v1777 = vunpack.c.l.b16 %v1738
    %v1778 = vunpack.c.l.b16 %v1739
    %v1779 = vpack.c.b16 %v1764, %v1763
    %v1780 = vpack.c.b16 %v1766, %v1765
    %v1781 = vpack.c.b16 %v1768, %v1767
    %v1782 = vpack.c.b16 %v1770, %v1769
    %v1783 = vpack.c.b16 %v1772, %v1771
    %v1784 = vpack.c.b16 %v1774, %v1773
    %v1785 = vpack.c.b16 %v1776, %v1775
    %v1786 = vpack.c.b16 %v1778, %v1777
    %1795 = vmatprep.subr.bf16.mxu0 0
    %1796 = vmatpush1.bf16.msra.mxu0 %v1779
    %1797 = vmatprep.subr.bf16.mxu0 0
    %1798 = vmatpush1.bf16.msra.mxu0 %v1780
    %1799 = vmatprep.subr.bf16.mxu0 0
    %1800 = vmatpush1.bf16.msra.mxu0 %v1781
    %1801 = vmatprep.subr.bf16.mxu0 0
    %1802 = vmatpush1.bf16.msra.mxu0 %v1782
    %1803 = vmatprep.subr.bf16.mxu0 0
    %1804 = vmatpush1.bf16.msra.mxu0 %v1783
    %1805 = vmatprep.subr.bf16.mxu0 0
    %1806 = vmatpush1.bf16.msra.mxu0 %v1784
    %1807 = vmatprep.subr.bf16.mxu0 0
    %1808 = vmatpush1.bf16.msra.mxu0 %v1785
    %1809 = vmatprep.subr.bf16.mxu0 0
    %1810 = vmatpush1.bf16.msra.mxu0 %v1786
    %1811 = vmatprep.subr.bf16.mxu0 0
    %1812 = vmatpush1.bf16.msra.mxu0 0
    %1813 = vmatprep.subr.bf16.mxu0 0
    %1814 = vmatpush1.bf16.msra.mxu0 0
    %1815 = vmatprep.subr.bf16.mxu0 0
    %1816 = vmatpush1.bf16.msra.mxu0 0
    %1817 = vmatprep.subr.bf16.mxu0 0
    %1818 = vmatpush1.bf16.msra.mxu0 0
    %1819 = vmatprep.subr.bf16.mxu0 0
    %1820 = vmatpush1.bf16.msra.mxu0 0
    %1821 = vmatprep.subr.bf16.mxu0 0
    %1822 = vmatpush1.bf16.msra.mxu0 0
    %1823 = vmatprep.subr.bf16.mxu0 0
    %1824 = vmatpush1.bf16.msra.mxu0 0
    %1825 = vmatprep.subr.bf16.mxu0 0
    %1826 = vmatpush1.bf16.msra.mxu0 0
    %1827 = vmatprep.mubr.bf16.mxu0 0
    %1828 = vmatmul.mubr.bf16.gmra.mrb[0].mxu0 %v1723
    %v1829 = vpop.f32.mrb[0].mxu0
    %v1830 = vadd.f32 %v1745, %v1829
    %v1831 = vpop.f32.mrb[0].mxu0
    %v1832 = vpop.f32.mrb[0].mxu0
    %v1833 = vadd.f32 %v1745, %v1832
    %v1834 = vpop.f32.mrb[0].mxu0
    %1835 = vdwg.mxu0
    %v1836 = vadd.f32 %v1830, %v1651
    %v1837 = vadd.f32 %v1833, %v1652
    %v1838 = vld [vmem:[%s59] sm:$0x1]
    %v1839 = vld [vmem:[%s61] sm:$0x1]
    %v1840 = vsel %vm290, %v1836, 0.0
    %1841 = vadd.xlane.f32.xlu0 %v1840
    %v1842 = vpop.xlane.xlu0 %1841
    %v1843 = vsel %vm290, %v1837, 0.0
    %1844 = vadd.xlane.f32.xlu0 %v1843
    %v1845 = vpop.xlane.xlu0 %1844
    %v1846 = vmul.f32 %v1842, %v813
    %v1847 = vmul.f32 %v1845, %v813
    %v1848 = vsub.f32 %v1836, %v1846
    %v1849 = vsub.f32 %v1837, %v1847
    %v1850 = vmul.f32 %v1848, %v1848
    %v1851 = vmul.f32 %v1849, %v1849
    %v1852 = vsel %vm290, %v1850, 0.0
    %1853 = vadd.xlane.f32.xlu0 %v1852
    %v1854 = vpop.xlane.xlu0 %1853
    %v1855 = vsel %vm290, %v1851, 0.0
    %1856 = vadd.xlane.f32.xlu0 %v1855
    %v1857 = vpop.xlane.xlu0 %1856
    %v1858 = vmul.f32 %v1854, %v813
    %v1859 = vmul.f32 %v1857, %v813
    %v1860 = vadd.f32 %v1858, 1e-05
    %v1861 = vadd.f32 %v1859, 1e-05
    %v1862 = vrsqrt.pop %v1860
    %v1863 = vrsqrt.pop %v1861
    %v1864 = vmul.f32 %v1848, %v1862
    %v1865 = vmul.f32 %v1849, %v1863
    %v1867 = vlaneseq
    %v1868 = vshrl.u32 %v1867, 7
    %v1869 = vsub.s32 0, %v1868
    %v1870 = vrot.slane %v1838, %v1869
    %v1872 = vmul.f32 %v1864, %v1870
    %v1873 = vmul.f32 %v1865, %v1870
    %v1875 = vlaneseq
    %v1876 = vshrl.u32 %v1875, 7
    %v1877 = vsub.s32 0, %v1876
    %v1878 = vrot.slane %v1839, %v1877
    %v1880 = vadd.f32 %v1872, %v1878
    %v1881 = vadd.f32 %v1873, %v1878
    %v1882 = vsel %vm290, %v1880, -inf
    %v1883 = vrot.slane %v1882, 4
    %v1884 = vmax.f32 %v1882, %v1883
    %v1885 = vrot.slane %v1884, 2
    %v1886 = vmax.f32 %v1884, %v1885
    %v1887 = vrot.slane %v1886, 1
    %v1888 = vmax.f32 %v1886, %v1887
    %v1889 = vsel %vm290, %v1881, -inf
    %v1890 = vrot.slane %v1889, 4
    %v1891 = vmax.f32 %v1889, %v1890
    %v1892 = vrot.slane %v1891, 2
    %v1893 = vmax.f32 %v1891, %v1892
    %v1894 = vrot.slane %v1893, 1
    %v1895 = vmax.f32 %v1893, %v1894
    %v1896 = vpack.c.bf16 %v1888, %v1888
    %v1897 = vpack.c.bf16 %v1895, %v1895
    %v1898 = vld [vmem:[%s63] sm:$0xf]
    %v1899 = vld [vmem:[%s63 + $0x4] sm:$0xf]
    %v1900 = vld [vmem:[%s63 + $0x8] sm:$0xf]
    %v1901 = vld [vmem:[%s63 + $0xc] sm:$0xf]
    %v1902 = vld [vmem:[%s65] sm:$0x1]
    %v1904 = vlaneseq
    %v1905 = vshrl.u32 %v1904, 7
    %v1906 = vsub.s32 0, %v1905
    %v1907 = vrot.slane %v1902, %v1906
    %v1911 = vunpack.c.l.b16 %v1896
    %v1912 = vunpack.c.l.b16 %v1897
    %vm1913 = vcmask 1041409
    %v1914 = vsel %vm1913, %v1912, %v1911
    %v1915 = vpack.c.b16 %v1914, %v1914
    %v1920 = vunpack.c.l.b16 %v1898
    %v1921 = vunpack.c.l.b16 %v1899
    %v1922 = vunpack.c.l.b16 %v1900
    %v1923 = vunpack.c.l.b16 %v1901
    %v1924 = vpack.c.b16 %v1921, %v1920
    %v1925 = vpack.c.b16 %v1923, %v1922
    %v1929 = vsel %vm290, %v1915, 0
    %1931 = vmatprep.subr.bf16.mxu0 0
    %1932 = vmatpush1.bf16.msra.mxu0 %v1924
    %1933 = vmatprep.subr.bf16.mxu0 0
    %1934 = vmatpush1.bf16.msra.mxu0 %v1925
    %1935 = vmatprep.subr.bf16.mxu0 0
    %1936 = vmatpush1.bf16.msra.mxu0 0
    %1937 = vmatprep.subr.bf16.mxu0 0
    %1938 = vmatpush1.bf16.msra.mxu0 0
    %1939 = vmatprep.subr.bf16.mxu0 0
    %1940 = vmatpush1.bf16.msra.mxu0 0
    %1941 = vmatprep.subr.bf16.mxu0 0
    %1942 = vmatpush1.bf16.msra.mxu0 0
    %1943 = vmatprep.subr.bf16.mxu0 0
    %1944 = vmatpush1.bf16.msra.mxu0 0
    %1945 = vmatprep.subr.bf16.mxu0 0
    %1946 = vmatpush1.bf16.msra.mxu0 0
    %1947 = vmatprep.subr.bf16.mxu0 0
    %1948 = vmatpush1.bf16.msra.mxu0 0
    %1949 = vmatprep.subr.bf16.mxu0 0
    %1950 = vmatpush1.bf16.msra.mxu0 0
    %1951 = vmatprep.subr.bf16.mxu0 0
    %1952 = vmatpush1.bf16.msra.mxu0 0
    %1953 = vmatprep.subr.bf16.mxu0 0
    %1954 = vmatpush1.bf16.msra.mxu0 0
    %1955 = vmatprep.subr.bf16.mxu0 0
    %1956 = vmatpush1.bf16.msra.mxu0 0
    %1957 = vmatprep.subr.bf16.mxu0 0
    %1958 = vmatpush1.bf16.msra.mxu0 0
    %1959 = vmatprep.subr.bf16.mxu0 0
    %1960 = vmatpush1.bf16.msra.mxu0 0
    %1961 = vmatprep.subr.bf16.mxu0 0
    %1962 = vmatpush1.bf16.msra.mxu0 0
    %1963 = vmatprep.mubr.bf16.mxu0 0
    %1964 = vmatmul.mubr.bf16.gmra.mrb[0].mxu0 %v1929
    %v1965 = vpop.f32.mrb[0].mxu0
    %v1966 = vadd.f32 %v1907, %v1965
    %v1967 = vpop.f32.mrb[0].mxu0
    %v1968 = vpop.f32.mrb[0].mxu0
    %v1969 = vpop.f32.mrb[0].mxu0
    %1970 = vdwg.mxu0
    %vm1971 = vcmask 33792
    %v1972 = vsel %vm1971, %v1966, -inf
    %1973 = vmax.xlane.f32.xlu0 %v1972
    %v1974 = vpop.xlane.xlu0 %1973
    %v1975 = vsub.f32 %v1966, %v1974
    %v1976 = vmul.f32 %v1975, 1.442695
    %v1977 = vpow.pop %v1976
    %v1978 = vsel %vm1971, %v1977, 0.0
    %1979 = vadd.xlane.f32.xlu0 %v1978
    %v1980 = vpop.xlane.xlu0 %1979
    %v1981 = vlog2.pop %v1980
    %v1982 = vmul.f32 %v1981, 0.6931472
    %v1983 = vsub.f32 %v1975, %v1982
    %1984 = vst.msk [vmem:[#allocation2] sm:$0x3] %vm1971, %v1983
    // Predicated region
    $region134: #{tpu_custom_call.1} parent=1 // pred_check
      _
    $region135: #{tpu_custom_call.1} parent=1 // pred_check_branch
      %1986 = sbr.rel (0) target = $region137
    $region136: #{tpu_custom_call.1} parent=1 // pred_region
      %s1988 = ssub.s32 32, 32
      %1989 = vsyncadd [#allocation3], %s1988
      %s1991 = sshll.u32 [#allocation2], 4
      %s1992 = int_to_ptr.vmem [resolvable:$true] %s1991
      %1994 = dma.vmem_to_hbm [thread:$0]  %s1992, 32, %s67, [#allocation3]
    $region137: #{tpu_custom_call.1} parent=1 // pred_fallthru
      _
    // Predicated region
    $region138: #{tpu_custom_call.1} parent=1 // pred_check
      _
    $region139: #{tpu_custom_call.1} parent=1 // pred_check_branch
      %1996 = sbr.rel (0) target = $region141
    $region140: #{tpu_custom_call.1} parent=1 // pred_region
      %1997 = dma.done [#allocation3], 32
    $region141: #{tpu_custom_call.1} parent=1 // pred_fallthru
      _
    %1998 = vsyncpa [#allocation3], 1

</llo_original>
